<compile_context>
chip_gen: v6e
topology: v6e:2x2x1
jax: 0.10.0
libtpu: 0.0.40
codegen_flags: <defaults>
</compile_context>

<pallas_src>
import functools
import math

import jax
import jax.numpy as jnp
from jax.experimental import pallas as pl
from jax.experimental.pallas import tpu as pltpu


# ----------------------------------------------------------------------------
# In-kernel helpers
# ----------------------------------------------------------------------------
def _layernorm(x, g, b, eps=1e-5):
    mean = jnp.mean(x, axis=-1, keepdims=True)
    var = jnp.mean(jnp.square(x - mean), axis=-1, keepdims=True)
    return (x - mean) * jax.lax.rsqrt(var + eps) * g + b


def _mha_core(xq, kv, mask, wq, wk, wv, bq, bk, bv, wo3, bo, nhead):
    """Multi-head attention on one batch item.

    xq: (Tq, E) f32   (already layer-normed query input)
    kv: (Tk, E) f32   (key/value input)
    mask: additive float mask broadcastable to (Tq, Tk)
    wq/wk/wv: (E, E) bf16, wo3: (H, dh, E) bf16, biases f32 (1, E)
    """
    xq_b = xq.astype(jnp.bfloat16)
    kv_b = kv.astype(jnp.bfloat16)
    q = jnp.dot(xq_b, wq, preferred_element_type=jnp.float32) + bq
    k = jnp.dot(kv_b, wk, preferred_element_type=jnp.float32) + bk
    v = jnp.dot(kv_b, wv, preferred_element_type=jnp.float32) + bv

    tq, emb = q.shape
    dh = emb // nhead
    scale = 1.0 / math.sqrt(dh)

    acc = jnp.zeros((tq, emb), jnp.float32)
    for h in range(nhead):                       # static, unrolled; no concat
        sl = slice(h * dh, (h + 1) * dh)
        qh = q[:, sl].astype(jnp.bfloat16)       # (Tq, dh)
        kh = k[:, sl].astype(jnp.bfloat16)       # (Tk, dh)
        vh = v[:, sl].astype(jnp.bfloat16)       # (Tk, dh)
        s = jnp.dot(qh, kh.T, preferred_element_type=jnp.float32) * scale + mask
        m = jnp.max(s, axis=-1, keepdims=True)
        p = jnp.exp(s - m)
        denom = jnp.sum(p, axis=-1, keepdims=True)
        p = p * pl.reciprocal(denom, approx=True)
        oh = jnp.dot(p.astype(jnp.bfloat16), vh,
                     preferred_element_type=jnp.float32)            # (Tq, dh)
        # Fold output projection into the head loop: acc += oh @ Wo[h]
        acc = acc + jnp.dot(oh.astype(jnp.bfloat16), wo3[h],
                            preferred_element_type=jnp.float32)
    return acc + bo


# ----------------------------------------------------------------------------
# Fused sub-layer kernels
# ----------------------------------------------------------------------------
def _self_block_kernel(x_ref, g_ref, b_ref, wq_ref, wk_ref, wv_ref,
                       bq_ref, bk_ref, bv_ref, wo_ref, bo_ref, mask_ref,
                       o_ref, *, nhead):
    # LN(x) -> self-attention(attn_mask) -> + residual, one batch item per step.
    x = x_ref[0]                                          # (T, E)
    xn = _layernorm(x, g_ref[...], b_ref[...])
    attn = _mha_core(xn, xn, mask_ref[...],
                     wq_ref[...], wk_ref[...], wv_ref[...],
                     bq_ref[...], bk_ref[...], bv_ref[...],
                     wo_ref[...], bo_ref[...], nhead)
    o_ref[0] = x + attn


def _cross_block_kernel(x_ref, mem_ref, g_ref, b_ref, wq_ref, wk_ref, wv_ref,
                        bq_ref, bk_ref, bv_ref, wo_ref, bo_ref, kpm_ref,
                        o_ref, *, nhead):
    # LN(x) -> cross-attention over memory (key_padding_mask) -> + residual.
    x = x_ref[0]                                          # (T, E)
    xn = _layernorm(x, g_ref[...], b_ref[...])
    attn = _mha_core(xn, mem_ref[0], kpm_ref[0],          # kpm: (1, S) additive
                     wq_ref[...], wk_ref[...], wv_ref[...],
                     bq_ref[...], bk_ref[...], bv_ref[...],
                     wo_ref[...], bo_ref[...], nhead)
    o_ref[0] = x + attn


def _ffn_block_kernel(x_ref, g_ref, b_ref, w1_ref, b1_ref, w2_ref, b2_ref,
                      o_ref):
    # LN(x) -> Linear -> ReLU -> Linear -> + residual, row-tiled.
    x = x_ref[...]                                        # (rows_tile, E)
    xn = _layernorm(x, g_ref[...], b_ref[...])
    h = jnp.dot(xn.astype(jnp.bfloat16), w1_ref[...],
                preferred_element_type=jnp.float32) + b1_ref[...]
    h = jnp.maximum(h, 0.0)
    y = jnp.dot(h.astype(jnp.bfloat16), w2_ref[...],
                preferred_element_type=jnp.float32) + b2_ref[...]
    o_ref[...] = x + y


# ----------------------------------------------------------------------------
# Pallas wrappers
# ----------------------------------------------------------------------------
def _full(shape):
    return pl.BlockSpec(shape, lambda *_: tuple(0 for _ in shape))


def self_attn_block(x, lp, attn_mask, nhead):
    B, T, E = x.shape
    H, dh = nhead, E // nhead
    kernel = functools.partial(_self_block_kernel, nhead=nhead)
    return pl.pallas_call(
        kernel,
        out_shape=jax.ShapeDtypeStruct((B, T, E), jnp.float32),
        grid=(B,),
        in_specs=[
            pl.BlockSpec((1, T, E), lambda b: (b, 0, 0)),   # x (residual)
            _full((1, E)), _full((1, E)),                   # ln gamma/beta
            _full((E, E)), _full((E, E)), _full((E, E)),    # wq wk wv (bf16)
            _full((1, E)), _full((1, E)), _full((1, E)),    # bq bk bv
            _full((H, dh, E)), _full((1, E)),               # wo3 (bf16), bo
            _full((T, T)),                                  # additive attn mask
        ],
        out_specs=pl.BlockSpec((1, T, E), lambda b: (b, 0, 0)),
        compiler_params=pltpu.CompilerParams(
            dimension_semantics=("parallel",)),
    )(x, lp['ln1_g'], lp['ln1_b'],
      lp['sa']['wq'], lp['sa']['wk'], lp['sa']['wv'],
      lp['sa']['bq'], lp['sa']['bk'], lp['sa']['bv'],
      lp['sa']['wo3'], lp['sa']['bo'], attn_mask)


def cross_attn_block(x, memory, lp, kpm_add, nhead):
    B, T, E = x.shape
    S = memory.shape[1]
    H, dh = nhead, E // nhead
    kernel = functools.partial(_cross_block_kernel, nhead=nhead)
    return pl.pallas_call(
        kernel,
        out_shape=jax.ShapeDtypeStruct((B, T, E), jnp.float32),
        grid=(B,),
        in_specs=[
            pl.BlockSpec((1, T, E), lambda b: (b, 0, 0)),   # x (residual)
            pl.BlockSpec((1, S, E), lambda b: (b, 0, 0)),   # memory
            _full((1, E)), _full((1, E)),                   # ln gamma/beta
            _full((E, E)), _full((E, E)), _full((E, E)),    # wq wk wv (bf16)
            _full((1, E)), _full((1, E)), _full((1, E)),    # bq bk bv
            _full((H, dh, E)), _full((1, E)),               # wo3 (bf16), bo
            pl.BlockSpec((1, 1, S), lambda b: (b, 0, 0)),   # key-padding mask
        ],
        out_specs=pl.BlockSpec((1, T, E), lambda b: (b, 0, 0)),
        compiler_params=pltpu.CompilerParams(
            dimension_semantics=("parallel",)),
    )(x, memory, lp['ln2_g'], lp['ln2_b'],
      lp['ca']['wq'], lp['ca']['wk'], lp['ca']['wv'],
      lp['ca']['bq'], lp['ca']['bk'], lp['ca']['bv'],
      lp['ca']['wo3'], lp['ca']['bo'], kpm_add)


def _pick_row_tile(rows, max_tile=256):
    if rows <= max_tile:
        return rows
    for t in range(max_tile, 7, -8):
        if rows % t == 0:
            return t
    return rows


def ffn_block(x, lp):
    B, T, E = x.shape
    rows = B * T
    FF = lp['ff_w1'].shape[1]
    tile = _pick_row_tile(rows)
    x2 = x.reshape(rows, E)
    out = pl.pallas_call(
        _ffn_block_kernel,
        out_shape=jax.ShapeDtypeStruct((rows, E), jnp.float32),
        grid=(rows // tile,),
        in_specs=[
            pl.BlockSpec((tile, E), lambda i: (i, 0)),      # x (residual)
            _full((1, E)), _full((1, E)),                   # ln gamma/beta
            _full((E, FF)), _full((1, FF)),                 # w1 (bf16), b1
            _full((FF, E)), _full((1, E)),                  # w2 (bf16), b2
        ],
        out_specs=pl.BlockSpec((tile, E), lambda i: (i, 0)),
        compiler_params=pltpu.CompilerParams(
            dimension_semantics=("parallel",)),
    )(x2, lp['ln3_g'], lp['ln3_b'],
      lp['ff_w1'], lp['ff_b1'], lp['ff_w2'], lp['ff_b2'])
    return out.reshape(B, T, E)


def decoder_layer_forward(tgt, memory, lp, tgt_mask, memory_kpm, nhead):
    """Pre-LN decoder layer (matches the PyTorch DecoderLayer.forward).

    tgt:        (B, T, E) f32
    memory:     (B, S, E) f32
    tgt_mask:   (T, T)    f32 additive attention mask for self-attention
    memory_kpm: (B, S)    bool key-padding mask (True = ignore) for cross-attn
    """
    B, S = memory.shape[0], memory.shape[1]
    kpm_add = jnp.where(memory_kpm, -1e9, 0.0).astype(jnp.float32)
    kpm_add = kpm_add.reshape(B, 1, S)

    x = self_attn_block(tgt, lp, tgt_mask, nhead)          # tgt + SA(LN1(tgt))
    x = cross_attn_block(x, memory, lp, kpm_add, nhead)    # x + CA(LN2(x), mem)
    x = ffn_block(x, lp)                                   # x + FFN(LN3(x))
    return x


# ----------------------------------------------------------------------------
# Parameter init (deterministic, synthetic)
# ----------------------------------------------------------------------------
def _dense(key, shape, scale=0.02):
    return scale * jax.random.normal(key, shape, dtype=jnp.float32)


def init_attn(key, E, H):
    dh = E // H
    ks = jax.random.split(key, 4)
    return dict(
        wq=_dense(ks[0], (E, E)).astype(jnp.bfloat16),
        wk=_dense(ks[1], (E, E)).astype(jnp.bfloat16),
        wv=_dense(ks[2], (E, E)).astype(jnp.bfloat16),
        bq=jnp.zeros((1, E), jnp.float32),
        bk=jnp.zeros((1, E), jnp.float32),
        bv=jnp.zeros((1, E), jnp.float32),
        # output projection stored head-split (H, dh, E) so the kernel folds it
        # into the per-head loop (no concat).
        wo3=_dense(ks[3], (E, E)).reshape(H, dh, E).astype(jnp.bfloat16),
        bo=jnp.zeros((1, E), jnp.float32),
    )


def init_decoder_layer(key, E, H, FF):
    ks = jax.random.split(key, 4)
    return dict(
        sa=init_attn(ks[0], E, H),
        ca=init_attn(ks[1], E, H),
        ff_w1=_dense(ks[2], (E, FF)).astype(jnp.bfloat16),
        ff_b1=jnp.zeros((1, FF), jnp.float32),
        ff_w2=_dense(ks[3], (FF, E)).astype(jnp.bfloat16),
        ff_b2=jnp.zeros((1, E), jnp.float32),
        ln1_g=jnp.ones((1, E), jnp.float32), ln1_b=jnp.zeros((1, E), jnp.float32),
        ln2_g=jnp.ones((1, E), jnp.float32), ln2_b=jnp.zeros((1, E), jnp.float32),
        ln3_g=jnp.ones((1, E), jnp.float32), ln3_b=jnp.zeros((1, E), jnp.float32),
    )


# ----------------------------------------------------------------------------
# Pure-JAX (f32) reference for a correctness spot check
# ----------------------------------------------------------------------------
def decoder_layer_ref(tgt, memory, lp, tgt_mask, memory_kpm, nhead):
    def ln(v, g, b):
        m = v.mean(-1, keepdims=True)
        var = ((v - m) ** 2).mean(-1, keepdims=True)
        return (v - m) / jnp.sqrt(var + 1e-5) * g + b

    def mha(xq, kv, a, mask):
        E = xq.shape[-1]
        H, dh = nhead, E // nhead
        f32 = jnp.float32
        q = xq @ a['wq'].astype(f32) + a['bq']
        k = kv @ a['wk'].astype(f32) + a['bk']
        v = kv @ a['wv'].astype(f32) + a['bv']
        B, Tq = q.shape[0], q.shape[1]
        Tk = k.shape[1]
        qh = q.reshape(B, Tq, H, dh).transpose(0, 2, 1, 3)
        kh = k.reshape(B, Tk, H, dh).transpose(0, 2, 1, 3)
        vh = v.reshape(B, Tk, H, dh).transpose(0, 2, 1, 3)
        s = jnp.einsum('bhqd,bhkd->bhqk', qh, kh) / math.sqrt(dh) + mask
        p = jax.nn.softmax(s, axis=-1)
        o = jnp.einsum('bhqk,bhkd->bhqd', p, vh)
        o = o.transpose(0, 2, 1, 3).reshape(B, Tq, E)
        wo = a['wo3'].astype(f32).reshape(E, E)
        return o @ wo + a['bo']

    B, S = memory.shape[0], memory.shape[1]
    kpm_add = jnp.where(memory_kpm, -1e9, 0.0)[:, None, None, :]   # (B,1,1,S)

    x = tgt + mha(ln(tgt, lp['ln1_g'], lp['ln1_b']),
                  ln(tgt, lp['ln1_g'], lp['ln1_b']),
                  lp['sa'], tgt_mask[None, None])
    x = x + mha(ln(x, lp['ln2_g'], lp['ln2_b']), memory, lp['ca'], kpm_add)
    xn = ln(x, lp['ln3_g'], lp['ln3_b'])
    h = jnp.maximum(xn @ lp['ff_w1'].astype(jnp.float32) + lp['ff_b1'], 0.0)
    x = x + (h @ lp['ff_w2'].astype(jnp.float32) + lp['ff_b2'])
    return x


# ----------------------------------------------------------------------------
# Demo
# ----------------------------------------------------------------------------
if __name__ == "__main__":
    B, T, S = 2, 8, 12
    E, NHEAD, FF = 32, 4, 64

    key = jax.random.PRNGKey(0)
    kp, kt, km = jax.random.split(key, 3)
    lp = init_decoder_layer(kp, E, NHEAD, FF)

    tgt = jax.random.normal(kt, (B, T, E), dtype=jnp.float32)
    memory = jax.random.normal(km, (B, S, E), dtype=jnp.float32)

    # causal (subsequent) additive mask for self-attention
    tgt_mask = jnp.where(jnp.triu(jnp.ones((T, T), jnp.float32), k=1) > 0,
                         -1e9, 0.0)
    # key-padding mask for cross-attention (True = padded memory position)
    memory_kpm = jnp.zeros((B, S), bool).at[1, -3:].set(True)

    out = decoder_layer_forward(tgt, memory, lp, tgt_mask, memory_kpm, NHEAD)
    jax.block_until_ready(out)

    assert out.shape == (B, T, E)
    assert bool(jnp.all(jnp.isfinite(out)))

    ref = decoder_layer_ref(tgt, memory, lp, tgt_mask, memory_kpm, NHEAD)
    max_diff = float(jnp.max(jnp.abs(out - ref)))
    assert max_diff < 5e-2, f"mismatch vs f32 reference: {max_diff}"

    print("KERNEL_OK")
</pallas_src>

<mosaic_0001>
module attributes {stable_mosaic.version = 11 : i64} {
  func.func @_self_block_kernel(%arg0: i32, %arg1: memref<1x8x32xf32, #tpu.memory_space<vmem>>, %arg2: memref<1x32xf32, #tpu.memory_space<vmem>>, %arg3: memref<1x32xf32, #tpu.memory_space<vmem>>, %arg4: memref<32x32xbf16, #tpu.memory_space<vmem>>, %arg5: memref<32x32xbf16, #tpu.memory_space<vmem>>, %arg6: memref<32x32xbf16, #tpu.memory_space<vmem>>, %arg7: memref<1x32xf32, #tpu.memory_space<vmem>>, %arg8: memref<1x32xf32, #tpu.memory_space<vmem>>, %arg9: memref<1x32xf32, #tpu.memory_space<vmem>>, %arg10: memref<4x8x32xbf16, #tpu.memory_space<vmem>>, %arg11: memref<1x32xf32, #tpu.memory_space<vmem>>, %arg12: memref<8x8xf32, #tpu.memory_space<vmem>>, %arg13: memref<1x8x32xf32, #tpu.memory_space<vmem>>) attributes {dimension_semantics = [#tpu.dimension_semantics<parallel>], iteration_bounds = array<i64: 2>, scalar_prefetch = 0 : i64, scratch_operands = 0 : i64, tpu.core_type = #tpu.core_type<tc>, window_params = [{transform_indices = @transform_0, window_bounds = array<i64: 1, 8, 32>}, {pipeline_mode = #tpu.pipeline_mode<synchronous>, transform_indices = @transform_1, window_bounds = array<i64: 1, 32>}, {pipeline_mode = #tpu.pipeline_mode<synchronous>, transform_indices = @transform_2, window_bounds = array<i64: 1, 32>}, {pipeline_mode = #tpu.pipeline_mode<synchronous>, transform_indices = @transform_3, window_bounds = array<i64: 32, 32>}, {pipeline_mode = #tpu.pipeline_mode<synchronous>, transform_indices = @transform_4, window_bounds = array<i64: 32, 32>}, {pipeline_mode = #tpu.pipeline_mode<synchronous>, transform_indices = @transform_5, window_bounds = array<i64: 32, 32>}, {pipeline_mode = #tpu.pipeline_mode<synchronous>, transform_indices = @transform_6, window_bounds = array<i64: 1, 32>}, {pipeline_mode = #tpu.pipeline_mode<synchronous>, transform_indices = @transform_7, window_bounds = array<i64: 1, 32>}, {pipeline_mode = #tpu.pipeline_mode<synchronous>, transform_indices = @transform_8, window_bounds = array<i64: 1, 32>}, {pipeline_mode = #tpu.pipeline_mode<synchronous>, transform_indices = @transform_9, window_bounds = array<i64: 4, 8, 32>}, {pipeline_mode = #tpu.pipeline_mode<synchronous>, transform_indices = @transform_10, window_bounds = array<i64: 1, 32>}, {pipeline_mode = #tpu.pipeline_mode<synchronous>, transform_indices = @transform_11, window_bounds = array<i64: 8, 8>}, {transform_indices = @transform_12, window_bounds = array<i64: 1, 8, 32>}]} {
    %c0 = arith.constant 0 : index
    %c0_0 = arith.constant 0 : index
    %c0_1 = arith.constant 0 : index
    %0 = vector.load %arg1[%c0, %c0_0, %c0_1] : memref<1x8x32xf32, #tpu.memory_space<vmem>>, vector<1x8x32xf32>
    %1 = vector.shape_cast %0 : vector<1x8x32xf32> to vector<8x32xf32>
    %c0_2 = arith.constant 0 : index
    %c0_3 = arith.constant 0 : index
    %2 = vector.load %arg2[%c0_2, %c0_3] : memref<1x32xf32, #tpu.memory_space<vmem>>, vector<1x32xf32>
    %c0_4 = arith.constant 0 : index
    %c0_5 = arith.constant 0 : index
    %3 = vector.load %arg3[%c0_4, %c0_5] : memref<1x32xf32, #tpu.memory_space<vmem>>, vector<1x32xf32>
    %cst = arith.constant dense<0.000000e+00> : vector<8xf32>
    %4 = vector.multi_reduction <add>, %1, %cst [1] : vector<8x32xf32> to vector<8xf32>
    %5 = vector.shape_cast %4 : vector<8xf32> to vector<8x1xf32>
    %cst_6 = arith.constant 3.200000e+01 : f32
    %6 = vector.broadcast %cst_6 : f32 to vector<8x1xf32>
    %7 = arith.divf %5, %6 : vector<8x1xf32>
    %8 = vector.broadcast %7 : vector<8x1xf32> to vector<8x32xf32>
    %9 = arith.subf %1, %8 : vector<8x32xf32>
    %10 = arith.mulf %9, %9 : vector<8x32xf32>
    %cst_7 = arith.constant dense<0.000000e+00> : vector<8xf32>
    %11 = vector.multi_reduction <add>, %10, %cst_7 [1] : vector<8x32xf32> to vector<8xf32>
    %12 = vector.shape_cast %11 : vector<8xf32> to vector<8x1xf32>
    %cst_8 = arith.constant 3.200000e+01 : f32
    %13 = vector.broadcast %cst_8 : f32 to vector<8x1xf32>
    %14 = arith.divf %12, %13 : vector<8x1xf32>
    %15 = vector.broadcast %7 : vector<8x1xf32> to vector<8x32xf32>
    %16 = arith.subf %1, %15 : vector<8x32xf32>
    %cst_9 = arith.constant 9.99999974E-6 : f32
    %17 = vector.broadcast %cst_9 : f32 to vector<8x1xf32>
    %18 = arith.addf %14, %17 : vector<8x1xf32>
    %19 = math.rsqrt %18 : vector<8x1xf32>
    %20 = vector.broadcast %19 : vector<8x1xf32> to vector<8x32xf32>
    %21 = arith.mulf %16, %20 : vector<8x32xf32>
    %22 = vector.broadcast %2 : vector<1x32xf32> to vector<8x32xf32>
    %23 = arith.mulf %21, %22 : vector<8x32xf32>
    %24 = vector.broadcast %3 : vector<1x32xf32> to vector<8x32xf32>
    %25 = arith.addf %23, %24 : vector<8x32xf32>
    %c0_10 = arith.constant 0 : index
    %c0_11 = arith.constant 0 : index
    %26 = vector.load %arg12[%c0_10, %c0_11] : memref<8x8xf32, #tpu.memory_space<vmem>>, vector<8x8xf32>
    %c0_12 = arith.constant 0 : index
    %c0_13 = arith.constant 0 : index
    %27 = vector.load %arg4[%c0_12, %c0_13] : memref<32x32xbf16, #tpu.memory_space<vmem>>, vector<32x32xbf16>
    %c0_14 = arith.constant 0 : index
    %c0_15 = arith.constant 0 : index
    %28 = vector.load %arg5[%c0_14, %c0_15] : memref<32x32xbf16, #tpu.memory_space<vmem>>, vector<32x32xbf16>
    %c0_16 = arith.constant 0 : index
    %c0_17 = arith.constant 0 : index
    %29 = vector.load %arg6[%c0_16, %c0_17] : memref<32x32xbf16, #tpu.memory_space<vmem>>, vector<32x32xbf16>
    %c0_18 = arith.constant 0 : index
    %c0_19 = arith.constant 0 : index
    %30 = vector.load %arg7[%c0_18, %c0_19] : memref<1x32xf32, #tpu.memory_space<vmem>>, vector<1x32xf32>
    %c0_20 = arith.constant 0 : index
    %c0_21 = arith.constant 0 : index
    %31 = vector.load %arg8[%c0_20, %c0_21] : memref<1x32xf32, #tpu.memory_space<vmem>>, vector<1x32xf32>
    %c0_22 = arith.constant 0 : index
    %c0_23 = arith.constant 0 : index
    %32 = vector.load %arg9[%c0_22, %c0_23] : memref<1x32xf32, #tpu.memory_space<vmem>>, vector<1x32xf32>
    %c0_24 = arith.constant 0 : index
    %c0_25 = arith.constant 0 : index
    %c0_26 = arith.constant 0 : index
    %33 = vector.load %arg10[%c0_24, %c0_25, %c0_26] : memref<4x8x32xbf16, #tpu.memory_space<vmem>>, vector<4x8x32xbf16>
    %c0_27 = arith.constant 0 : index
    %c0_28 = arith.constant 0 : index
    %34 = vector.load %arg11[%c0_27, %c0_28] : memref<1x32xf32, #tpu.memory_space<vmem>>, vector<1x32xf32>
    %35 = arith.truncf %25 : vector<8x32xf32> to vector<8x32xbf16>
    %36 = arith.truncf %25 : vector<8x32xf32> to vector<8x32xbf16>
    %cst_29 = arith.constant dense<0.000000e+00> : vector<8x32xf32>
    %37 = tpu.matmul %35, %27, %cst_29 {dimension_numbers = #tpu.dot_dimension_numbers<[1], [0], [0], [1], [0, 0, 1, 1], [], []>} : vector<8x32xbf16>, vector<32x32xbf16>, vector<8x32xf32> -> vector<8x32xf32>
    %38 = vector.broadcast %30 : vector<1x32xf32> to vector<8x32xf32>
    %39 = arith.addf %37, %38 : vector<8x32xf32>
    %cst_30 = arith.constant dense<0.000000e+00> : vector<8x32xf32>
    %40 = tpu.matmul %36, %28, %cst_30 {dimension_numbers = #tpu.dot_dimension_numbers<[1], [0], [0], [1], [0, 0, 1, 1], [], []>} : vector<8x32xbf16>, vector<32x32xbf16>, vector<8x32xf32> -> vector<8x32xf32>
    %41 = vector.broadcast %31 : vector<1x32xf32> to vector<8x32xf32>
    %42 = arith.addf %40, %41 : vector<8x32xf32>
    %cst_31 = arith.constant dense<0.000000e+00> : vector<8x32xf32>
    %43 = tpu.matmul %36, %29, %cst_31 {dimension_numbers = #tpu.dot_dimension_numbers<[1], [0], [0], [1], [0, 0, 1, 1], [], []>} : vector<8x32xbf16>, vector<32x32xbf16>, vector<8x32xf32> -> vector<8x32xf32>
    %44 = vector.broadcast %32 : vector<1x32xf32> to vector<8x32xf32>
    %45 = arith.addf %43, %44 : vector<8x32xf32>
    %cst_32 = arith.constant 0.000000e+00 : f32
    %46 = vector.broadcast %cst_32 : f32 to vector<8x32xf32>
    %47 = vector.extract_strided_slice %39 {offsets = [0, 0], sizes = [8, 8], strides = [1, 1]} : vector<8x32xf32> to vector<8x8xf32>
    %48 = arith.truncf %47 : vector<8x8xf32> to vector<8x8xbf16>
    %49 = vector.extract_strided_slice %42 {offsets = [0, 0], sizes = [8, 8], strides = [1, 1]} : vector<8x32xf32> to vector<8x8xf32>
    %50 = arith.truncf %49 : vector<8x8xf32> to vector<8x8xbf16>
    %51 = vector.extract_strided_slice %45 {offsets = [0, 0], sizes = [8, 8], strides = [1, 1]} : vector<8x32xf32> to vector<8x8xf32>
    %52 = arith.truncf %51 : vector<8x8xf32> to vector<8x8xbf16>
    %53 = tpu.transpose %50, [1, 0] : vector<8x8xbf16> -> vector<8x8xbf16>
    %cst_33 = arith.constant dense<0.000000e+00> : vector<8x8xf32>
    %54 = tpu.matmul %48, %53, %cst_33 {dimension_numbers = #tpu.dot_dimension_numbers<[1], [0], [0], [1], [0, 0, 1, 1], [], []>} : vector<8x8xbf16>, vector<8x8xbf16>, vector<8x8xf32> -> vector<8x8xf32>
    %cst_34 = arith.constant 0.353553385 : f32
    %55 = vector.broadcast %cst_34 : f32 to vector<8x8xf32>
    %56 = arith.mulf %54, %55 : vector<8x8xf32>
    %57 = arith.addf %56, %26 : vector<8x8xf32>
    %cst_35 = arith.constant dense<0xFF800000> : vector<8xf32>
    %58 = vector.multi_reduction <maximumf>, %57, %cst_35 [1] : vector<8x8xf32> to vector<8xf32>
    %59 = vector.shape_cast %58 : vector<8xf32> to vector<8x1xf32>
    %60 = vector.broadcast %59 : vector<8x1xf32> to vector<8x8xf32>
    %61 = arith.subf %57, %60 : vector<8x8xf32>
    %62 = math.exp %61 : vector<8x8xf32>
    %cst_36 = arith.constant dense<0.000000e+00> : vector<8xf32>
    %63 = vector.multi_reduction <add>, %62, %cst_36 [1] : vector<8x8xf32> to vector<8xf32>
    %64 = vector.shape_cast %63 : vector<8xf32> to vector<8x1xf32>
    %65 = tpu.reciprocal %64 {approx = true} : vector<8x1xf32> -> vector<8x1xf32>
    %66 = vector.broadcast %65 : vector<8x1xf32> to vector<8x8xf32>
    %67 = arith.mulf %62, %66 : vector<8x8xf32>
    %68 = arith.truncf %67 : vector<8x8xf32> to vector<8x8xbf16>
    %cst_37 = arith.constant dense<0.000000e+00> : vector<8x8xf32>
    %69 = tpu.matmul %68, %52, %cst_37 {dimension_numbers = #tpu.dot_dimension_numbers<[1], [0], [0], [1], [0, 0, 1, 1], [], []>} : vector<8x8xbf16>, vector<8x8xbf16>, vector<8x8xf32> -> vector<8x8xf32>
    %70 = arith.truncf %69 : vector<8x8xf32> to vector<8x8xbf16>
    %71 = vector.extract_strided_slice %33 {offsets = [0, 0, 0], sizes = [1, 8, 32], strides = [1, 1, 1]} : vector<4x8x32xbf16> to vector<1x8x32xbf16>
    %72 = vector.shape_cast %71 : vector<1x8x32xbf16> to vector<8x32xbf16>
    %cst_38 = arith.constant dense<0.000000e+00> : vector<8x32xf32>
    %73 = tpu.matmul %70, %72, %cst_38 {dimension_numbers = #tpu.dot_dimension_numbers<[1], [0], [0], [1], [0, 0, 1, 1], [], []>} : vector<8x8xbf16>, vector<8x32xbf16>, vector<8x32xf32> -> vector<8x32xf32>
    %74 = arith.addf %46, %73 : vector<8x32xf32>
    %75 = vector.extract_strided_slice %39 {offsets = [0, 8], sizes = [8, 8], strides = [1, 1]} : vector<8x32xf32> to vector<8x8xf32>
    %76 = arith.truncf %75 : vector<8x8xf32> to vector<8x8xbf16>
    %77 = vector.extract_strided_slice %42 {offsets = [0, 8], sizes = [8, 8], strides = [1, 1]} : vector<8x32xf32> to vector<8x8xf32>
    %78 = arith.truncf %77 : vector<8x8xf32> to vector<8x8xbf16>
    %79 = vector.extract_strided_slice %45 {offsets = [0, 8], sizes = [8, 8], strides = [1, 1]} : vector<8x32xf32> to vector<8x8xf32>
    %80 = arith.truncf %79 : vector<8x8xf32> to vector<8x8xbf16>
    %81 = tpu.transpose %78, [1, 0] : vector<8x8xbf16> -> vector<8x8xbf16>
    %cst_39 = arith.constant dense<0.000000e+00> : vector<8x8xf32>
    %82 = tpu.matmul %76, %81, %cst_39 {dimension_numbers = #tpu.dot_dimension_numbers<[1], [0], [0], [1], [0, 0, 1, 1], [], []>} : vector<8x8xbf16>, vector<8x8xbf16>, vector<8x8xf32> -> vector<8x8xf32>
    %cst_40 = arith.constant 0.353553385 : f32
    %83 = vector.broadcast %cst_40 : f32 to vector<8x8xf32>
    %84 = arith.mulf %82, %83 : vector<8x8xf32>
    %85 = arith.addf %84, %26 : vector<8x8xf32>
    %cst_41 = arith.constant dense<0xFF800000> : vector<8xf32>
    %86 = vector.multi_reduction <maximumf>, %85, %cst_41 [1] : vector<8x8xf32> to vector<8xf32>
    %87 = vector.shape_cast %86 : vector<8xf32> to vector<8x1xf32>
    %88 = vector.broadcast %87 : vector<8x1xf32> to vector<8x8xf32>
    %89 = arith.subf %85, %88 : vector<8x8xf32>
    %90 = math.exp %89 : vector<8x8xf32>
    %cst_42 = arith.constant dense<0.000000e+00> : vector<8xf32>
    %91 = vector.multi_reduction <add>, %90, %cst_42 [1] : vector<8x8xf32> to vector<8xf32>
    %92 = vector.shape_cast %91 : vector<8xf32> to vector<8x1xf32>
    %93 = tpu.reciprocal %92 {approx = true} : vector<8x1xf32> -> vector<8x1xf32>
    %94 = vector.broadcast %93 : vector<8x1xf32> to vector<8x8xf32>
    %95 = arith.mulf %90, %94 : vector<8x8xf32>
    %96 = arith.truncf %95 : vector<8x8xf32> to vector<8x8xbf16>
    %cst_43 = arith.constant dense<0.000000e+00> : vector<8x8xf32>
    %97 = tpu.matmul %96, %80, %cst_43 {dimension_numbers = #tpu.dot_dimension_numbers<[1], [0], [0], [1], [0, 0, 1, 1], [], []>} : vector<8x8xbf16>, vector<8x8xbf16>, vector<8x8xf32> -> vector<8x8xf32>
    %98 = arith.truncf %97 : vector<8x8xf32> to vector<8x8xbf16>
    %99 = vector.extract_strided_slice %33 {offsets = [1, 0, 0], sizes = [1, 8, 32], strides = [1, 1, 1]} : vector<4x8x32xbf16> to vector<1x8x32xbf16>
    %100 = vector.shape_cast %99 : vector<1x8x32xbf16> to vector<8x32xbf16>
    %cst_44 = arith.constant dense<0.000000e+00> : vector<8x32xf32>
    %101 = tpu.matmul %98, %100, %cst_44 {dimension_numbers = #tpu.dot_dimension_numbers<[1], [0], [0], [1], [0, 0, 1, 1], [], []>} : vector<8x8xbf16>, vector<8x32xbf16>, vector<8x32xf32> -> vector<8x32xf32>
    %102 = arith.addf %74, %101 : vector<8x32xf32>
    %103 = vector.extract_strided_slice %39 {offsets = [0, 16], sizes = [8, 8], strides = [1, 1]} : vector<8x32xf32> to vector<8x8xf32>
    %104 = arith.truncf %103 : vector<8x8xf32> to vector<8x8xbf16>
    %105 = vector.extract_strided_slice %42 {offsets = [0, 16], sizes = [8, 8], strides = [1, 1]} : vector<8x32xf32> to vector<8x8xf32>
    %106 = arith.truncf %105 : vector<8x8xf32> to vector<8x8xbf16>
    %107 = vector.extract_strided_slice %45 {offsets = [0, 16], sizes = [8, 8], strides = [1, 1]} : vector<8x32xf32> to vector<8x8xf32>
    %108 = arith.truncf %107 : vector<8x8xf32> to vector<8x8xbf16>
    %109 = tpu.transpose %106, [1, 0] : vector<8x8xbf16> -> vector<8x8xbf16>
    %cst_45 = arith.constant dense<0.000000e+00> : vector<8x8xf32>
    %110 = tpu.matmul %104, %109, %cst_45 {dimension_numbers = #tpu.dot_dimension_numbers<[1], [0], [0], [1], [0, 0, 1, 1], [], []>} : vector<8x8xbf16>, vector<8x8xbf16>, vector<8x8xf32> -> vector<8x8xf32>
    %cst_46 = arith.constant 0.353553385 : f32
    %111 = vector.broadcast %cst_46 : f32 to vector<8x8xf32>
    %112 = arith.mulf %110, %111 : vector<8x8xf32>
    %113 = arith.addf %112, %26 : vector<8x8xf32>
    %cst_47 = arith.constant dense<0xFF800000> : vector<8xf32>
    %114 = vector.multi_reduction <maximumf>, %113, %cst_47 [1] : vector<8x8xf32> to vector<8xf32>
    %115 = vector.shape_cast %114 : vector<8xf32> to vector<8x1xf32>
    %116 = vector.broadcast %115 : vector<8x1xf32> to vector<8x8xf32>
    %117 = arith.subf %113, %116 : vector<8x8xf32>
    %118 = math.exp %117 : vector<8x8xf32>
    %cst_48 = arith.constant dense<0.000000e+00> : vector<8xf32>
    %119 = vector.multi_reduction <add>, %118, %cst_48 [1] : vector<8x8xf32> to vector<8xf32>
    %120 = vector.shape_cast %119 : vector<8xf32> to vector<8x1xf32>
    %121 = tpu.reciprocal %120 {approx = true} : vector<8x1xf32> -> vector<8x1xf32>
    %122 = vector.broadcast %121 : vector<8x1xf32> to vector<8x8xf32>
    %123 = arith.mulf %118, %122 : vector<8x8xf32>
    %124 = arith.truncf %123 : vector<8x8xf32> to vector<8x8xbf16>
    %cst_49 = arith.constant dense<0.000000e+00> : vector<8x8xf32>
    %125 = tpu.matmul %124, %108, %cst_49 {dimension_numbers = #tpu.dot_dimension_numbers<[1], [0], [0], [1], [0, 0, 1, 1], [], []>} : vector<8x8xbf16>, vector<8x8xbf16>, vector<8x8xf32> -> vector<8x8xf32>
    %126 = arith.truncf %125 : vector<8x8xf32> to vector<8x8xbf16>
    %127 = vector.extract_strided_slice %33 {offsets = [2, 0, 0], sizes = [1, 8, 32], strides = [1, 1, 1]} : vector<4x8x32xbf16> to vector<1x8x32xbf16>
    %128 = vector.shape_cast %127 : vector<1x8x32xbf16> to vector<8x32xbf16>
    %cst_50 = arith.constant dense<0.000000e+00> : vector<8x32xf32>
    %129 = tpu.matmul %126, %128, %cst_50 {dimension_numbers = #tpu.dot_dimension_numbers<[1], [0], [0], [1], [0, 0, 1, 1], [], []>} : vector<8x8xbf16>, vector<8x32xbf16>, vector<8x32xf32> -> vector<8x32xf32>
    %130 = arith.addf %102, %129 : vector<8x32xf32>
    %131 = vector.extract_strided_slice %39 {offsets = [0, 24], sizes = [8, 8], strides = [1, 1]} : vector<8x32xf32> to vector<8x8xf32>
    %132 = arith.truncf %131 : vector<8x8xf32> to vector<8x8xbf16>
    %133 = vector.extract_strided_slice %42 {offsets = [0, 24], sizes = [8, 8], strides = [1, 1]} : vector<8x32xf32> to vector<8x8xf32>
    %134 = arith.truncf %133 : vector<8x8xf32> to vector<8x8xbf16>
    %135 = vector.extract_strided_slice %45 {offsets = [0, 24], sizes = [8, 8], strides = [1, 1]} : vector<8x32xf32> to vector<8x8xf32>
    %136 = arith.truncf %135 : vector<8x8xf32> to vector<8x8xbf16>
    %137 = tpu.transpose %134, [1, 0] : vector<8x8xbf16> -> vector<8x8xbf16>
    %cst_51 = arith.constant dense<0.000000e+00> : vector<8x8xf32>
    %138 = tpu.matmul %132, %137, %cst_51 {dimension_numbers = #tpu.dot_dimension_numbers<[1], [0], [0], [1], [0, 0, 1, 1], [], []>} : vector<8x8xbf16>, vector<8x8xbf16>, vector<8x8xf32> -> vector<8x8xf32>
    %cst_52 = arith.constant 0.353553385 : f32
    %139 = vector.broadcast %cst_52 : f32 to vector<8x8xf32>
    %140 = arith.mulf %138, %139 : vector<8x8xf32>
    %141 = arith.addf %140, %26 : vector<8x8xf32>
    %cst_53 = arith.constant dense<0xFF800000> : vector<8xf32>
    %142 = vector.multi_reduction <maximumf>, %141, %cst_53 [1] : vector<8x8xf32> to vector<8xf32>
    %143 = vector.shape_cast %142 : vector<8xf32> to vector<8x1xf32>
    %144 = vector.broadcast %143 : vector<8x1xf32> to vector<8x8xf32>
    %145 = arith.subf %141, %144 : vector<8x8xf32>
    %146 = math.exp %145 : vector<8x8xf32>
    %cst_54 = arith.constant dense<0.000000e+00> : vector<8xf32>
    %147 = vector.multi_reduction <add>, %146, %cst_54 [1] : vector<8x8xf32> to vector<8xf32>
    %148 = vector.shape_cast %147 : vector<8xf32> to vector<8x1xf32>
    %149 = tpu.reciprocal %148 {approx = true} : vector<8x1xf32> -> vector<8x1xf32>
    %150 = vector.broadcast %149 : vector<8x1xf32> to vector<8x8xf32>
    %151 = arith.mulf %146, %150 : vector<8x8xf32>
    %152 = arith.truncf %151 : vector<8x8xf32> to vector<8x8xbf16>
    %cst_55 = arith.constant dense<0.000000e+00> : vector<8x8xf32>
    %153 = tpu.matmul %152, %136, %cst_55 {dimension_numbers = #tpu.dot_dimension_numbers<[1], [0], [0], [1], [0, 0, 1, 1], [], []>} : vector<8x8xbf16>, vector<8x8xbf16>, vector<8x8xf32> -> vector<8x8xf32>
    %154 = arith.truncf %153 : vector<8x8xf32> to vector<8x8xbf16>
    %155 = vector.extract_strided_slice %33 {offsets = [3, 0, 0], sizes = [1, 8, 32], strides = [1, 1, 1]} : vector<4x8x32xbf16> to vector<1x8x32xbf16>
    %156 = vector.shape_cast %155 : vector<1x8x32xbf16> to vector<8x32xbf16>
    %cst_56 = arith.constant dense<0.000000e+00> : vector<8x32xf32>
    %157 = tpu.matmul %154, %156, %cst_56 {dimension_numbers = #tpu.dot_dimension_numbers<[1], [0], [0], [1], [0, 0, 1, 1], [], []>} : vector<8x8xbf16>, vector<8x32xbf16>, vector<8x32xf32> -> vector<8x32xf32>
    %158 = arith.addf %130, %157 : vector<8x32xf32>
    %159 = vector.broadcast %34 : vector<1x32xf32> to vector<8x32xf32>
    %160 = arith.addf %158, %159 : vector<8x32xf32>
    %161 = arith.addf %1, %160 : vector<8x32xf32>
    %c0_57 = arith.constant 0 : index
    %c0_58 = arith.constant 0 : index
    %c0_59 = arith.constant 0 : index
    %162 = vector.load %arg13[%c0_57, %c0_58, %c0_59] : memref<1x8x32xf32, #tpu.memory_space<vmem>>, vector<1x8x32xf32>
    %163 = vector.shape_cast %162 : vector<1x8x32xf32> to vector<8x32xf32>
    %164 = vector.shape_cast %161 : vector<8x32xf32> to vector<1x8x32xf32>
    tpu.vector_store %arg13[%c0_57, %c0_58, %c0_59], %164 {strides = array<i32>} : memref<1x8x32xf32, #tpu.memory_space<vmem>>, vector<1x8x32xf32>,
    return
  }
  func.func @transform_0(%arg0: i32) -> (i32, i32, i32) {
    %c0_i32 = arith.constant 0 : i32
    %c0_i32_0 = arith.constant 0 : i32
    %c0_i32_1 = arith.constant 0 : i32
    return %arg0, %c0_i32, %c0_i32_0 : i32, i32, i32
  }
  func.func @transform_1(%arg0: i32) -> (i32, i32) {
    %c0_i32 = arith.constant 0 : i32
    %c0_i32_0 = arith.constant 0 : i32
    %c0_i32_1 = arith.constant 0 : i32
    return %c0_i32, %c0_i32_0 : i32, i32
  }
  func.func @transform_2(%arg0: i32) -> (i32, i32) {
    %c0_i32 = arith.constant 0 : i32
    %c0_i32_0 = arith.constant 0 : i32
    %c0_i32_1 = arith.constant 0 : i32
    return %c0_i32, %c0_i32_0 : i32, i32
  }
  func.func @transform_3(%arg0: i32) -> (i32, i32) {
    %c0_i32 = arith.constant 0 : i32
    %c0_i32_0 = arith.constant 0 : i32
    %c0_i32_1 = arith.constant 0 : i32
    return %c0_i32, %c0_i32_0 : i32, i32
  }
  func.func @transform_4(%arg0: i32) -> (i32, i32) {
    %c0_i32 = arith.constant 0 : i32
    %c0_i32_0 = arith.constant 0 : i32
    %c0_i32_1 = arith.constant 0 : i32
    return %c0_i32, %c0_i32_0 : i32, i32
  }
  func.func @transform_5(%arg0: i32) -> (i32, i32) {
    %c0_i32 = arith.constant 0 : i32
    %c0_i32_0 = arith.constant 0 : i32
    %c0_i32_1 = arith.constant 0 : i32
    return %c0_i32, %c0_i32_0 : i32, i32
  }
  func.func @transform_6(%arg0: i32) -> (i32, i32) {
    %c0_i32 = arith.constant 0 : i32
    %c0_i32_0 = arith.constant 0 : i32
    %c0_i32_1 = arith.constant 0 : i32
    return %c0_i32, %c0_i32_0 : i32, i32
  }
  func.func @transform_7(%arg0: i32) -> (i32, i32) {
    %c0_i32 = arith.constant 0 : i32
    %c0_i32_0 = arith.constant 0 : i32
    %c0_i32_1 = arith.constant 0 : i32
    return %c0_i32, %c0_i32_0 : i32, i32
  }
  func.func @transform_8(%arg0: i32) -> (i32, i32) {
    %c0_i32 = arith.constant 0 : i32
    %c0_i32_0 = arith.constant 0 : i32
    %c0_i32_1 = arith.constant 0 : i32
    return %c0_i32, %c0_i32_0 : i32, i32
  }
  func.func @transform_9(%arg0: i32) -> (i32, i32, i32) {
    %c0_i32 = arith.constant 0 : i32
    %c0_i32_0 = arith.constant 0 : i32
    %c0_i32_1 = arith.constant 0 : i32
    %c0_i32_2 = arith.constant 0 : i32
    return %c0_i32, %c0_i32_0, %c0_i32_1 : i32, i32, i32
  }
  func.func @transform_10(%arg0: i32) -> (i32, i32) {
    %c0_i32 = arith.constant 0 : i32
    %c0_i32_0 = arith.constant 0 : i32
    %c0_i32_1 = arith.constant 0 : i32
    return %c0_i32, %c0_i32_0 : i32, i32
  }
  func.func @transform_11(%arg0: i32) -> (i32, i32) {
    %c0_i32 = arith.constant 0 : i32
    %c0_i32_0 = arith.constant 0 : i32
    %c0_i32_1 = arith.constant 0 : i32
    return %c0_i32, %c0_i32_0 : i32, i32
  }
  func.func @transform_12(%arg0: i32) -> (i32, i32, i32) {
    %c0_i32 = arith.constant 0 : i32
    %c0_i32_0 = arith.constant 0 : i32
    %c0_i32_1 = arith.constant 0 : i32
    return %arg0, %c0_i32, %c0_i32_0 : i32, i32, i32
  }
}

</mosaic_0001>

<llo_original>
// kernel: tpu_custom_call.1
$region0: #{tpu_custom_call.1}
  #allocation0 [shape = 'u32[]', space=smem, size = 0x4, offset = 0x4, fixed_abs, tag = 'smem constant byte address 0x4 - core index']
  #allocation1 [shape = 'u32[144,128]{1,0:T(1,128)}', space=vmem, size = 0x12000, scoped, tag = 'internal scratch']
  %s0 = inlined_call_operand.hbm [shape: f32[2,8,32], index: 0, kind: input, shape index: {}]
  %s1 = inlined_call_operand.hbm [shape: f32[1,32], index: 1, kind: input, shape index: {}]
  %s2 = inlined_call_operand.hbm [shape: f32[1,32], index: 2, kind: input, shape index: {}]
  %s3 = inlined_call_operand.hbm [shape: bf16[32,32], index: 3, kind: input, shape index: {}]
  %s4 = inlined_call_operand.hbm [shape: bf16[32,32], index: 4, kind: input, shape index: {}]
  %s5 = inlined_call_operand.hbm [shape: bf16[32,32], index: 5, kind: input, shape index: {}]
  %s6 = inlined_call_operand.hbm [shape: f32[1,32], index: 6, kind: input, shape index: {}]
  %s7 = inlined_call_operand.hbm [shape: f32[1,32], index: 7, kind: input, shape index: {}]
  %s8 = inlined_call_operand.hbm [shape: f32[1,32], index: 8, kind: input, shape index: {}]
  %s9 = inlined_call_operand.vmem [shape: bf16[4,8,32], index: 9, kind: input, shape index: {}]
  %s10 = inlined_call_operand.vmem [shape: f32[1,32], index: 10, kind: input, shape index: {}]
  %s11 = inlined_call_operand.hbm [shape: f32[8,8], index: 11, kind: input, shape index: {}]
  %s12 = inlined_call_operand.hbm [shape: f32[2,8,32], index: 12, kind: output, shape index: {}]
  %s13 = sld [smem:[#allocation0]]
  $region121: #{tpu_custom_call.1} parent=0
    _
  %s15 = ssub.s32 1, %s13
  %s16 = scalar_select 0, %s15, %s13
  $region1: #{tpu_custom_call.1} parent=0
    #allocation2 [shape = 'u8[8192]{0}', space=vmem, size = 0x2000, scoped, tag = 'input window, operand 0']
    #allocation3 [shape = 's32[2]{0}', space=sflag, size = 0x8, scoped, tag = 'scoped memory for tpu_custom_call.1']
    #allocation4 [shape = 's32[2]{0}', space=sflag, size = 0x8, scoped, tag = 'scoped memory for tpu_custom_call.1']
    #allocation5 [shape = 'u8[512]{0}', space=vmem, size = 0x400, scoped, tag = 'input window, operand 1, single buffered']
    #allocation6 [shape = 's32[1]{0}', space=sflag, size = 0x4, scoped, tag = 'scoped memory for tpu_custom_call.1']
    #allocation7 [shape = 'u8[512]{0}', space=vmem, size = 0x400, scoped, tag = 'input window, operand 2, single buffered']
    #allocation8 [shape = 'u8[8192]{0}', space=vmem, size = 0x2000, scoped, tag = 'input window, operand 3, single buffered']
    #allocation9 [shape = 's32[1]{0}', space=sflag, size = 0x4, scoped, tag = 'scoped memory for tpu_custom_call.1']
    #allocation10 [shape = 'u8[8192]{0}', space=vmem, size = 0x2000, scoped, tag = 'input window, operand 4, single buffered']
    #allocation11 [shape = 'u8[8192]{0}', space=vmem, size = 0x2000, scoped, tag = 'input window, operand 5, single buffered']
    #allocation12 [shape = 's32[1]{0}', space=sflag, size = 0x4, scoped, tag = 'scoped memory for tpu_custom_call.1']
    #allocation13 [shape = 'u8[512]{0}', space=vmem, size = 0x400, scoped, tag = 'input window, operand 6, single buffered']
    #allocation14 [shape = 'u8[512]{0}', space=vmem, size = 0x400, scoped, tag = 'input window, operand 7, single buffered']
    #allocation15 [shape = 's32[1]{0}', space=sflag, size = 0x4, scoped, tag = 'scoped memory for tpu_custom_call.1']
    #allocation16 [shape = 'u8[512]{0}', space=vmem, size = 0x400, scoped, tag = 'input window, operand 8, single buffered']
    #allocation17 [shape = 'u8[4096]{0}', space=vmem, size = 0x1000, scoped, tag = 'input window, operand 11, single buffered']
    #allocation18 [shape = 's32[1]{0}', space=sflag, size = 0x4, scoped, tag = 'scoped memory for tpu_custom_call.1']
    #allocation19 [shape = 'u8[8192]{0}', space=vmem, size = 0x2000, scoped, tag = 'output window, operand 0']
    %17 = vsyncpa [#allocation3], 0
    %s18 = scalar_lea.sflag [#allocation3], 1
    %19 = vsyncpa %s18, 0
    %20 = vsyncpa [#allocation6], 0
    %21 = vsyncpa [#allocation9], 0
    %22 = vsyncpa [#allocation12], 0
    %23 = vsyncpa [#allocation15], 0
    %24 = vsyncpa [#allocation18], 0
    %25 = vsyncpa [#allocation4], 0
    %s26 = scalar_lea.sflag [#allocation4], 1
    %27 = vsyncpa %s26, 0
    loop: start=0, step=1, limit=4
    $region2: #{tpu_custom_call.1} parent=1 // loop_pre_header
      _
    $region3: #{tpu_custom_call.1} parent=1 // loop_header
      %s29 = sphi 0, %s33
      %p30 = scmp.ge.s32.totalorder %s29, 4
      %s39 = sphi 0, %s41
      %s42 = sphi 0, %s39
      %s43 = sphi 0, %s42
      %s59 = sphi 0, %s43
      %s63 = sphi 0, %s63
      %s65 = sphi 0, %s63
      %s66 = sphi 0, %s65
      %s80 = sphi 0, %s66
      %s84 = sphi 0, %s84
      %s86 = sphi 0, %s84
      %s87 = sphi 0, %s86
      %s101 = sphi 0, %s87
      %s105 = sphi 0, %s105
      %s107 = sphi 0, %s105
      %s108 = sphi 0, %s107
      %s122 = sphi 0, %s108
      %s126 = sphi 0, %s126
      %s128 = sphi 0, %s126
      %s129 = sphi 0, %s128
      %s143 = sphi 0, %s129
      %s147 = sphi 0, %s147
      %s149 = sphi 0, %s147
      %s150 = sphi 0, %s149
      %s164 = sphi 0, %s150
      %s168 = sphi 0, %s168
      %s170 = sphi 0, %s168
      %s171 = sphi 0, %s170
      %s185 = sphi 0, %s171
      %s189 = sphi 0, %s189
      %s191 = sphi 0, %s189
      %s192 = sphi 0, %s191
      %s206 = sphi 0, %s192
      %s210 = sphi 0, %s210
      %s212 = sphi 0, %s210
      %s213 = sphi 0, %s212
      %s227 = sphi 0, %s213
      %s231 = sphi 0, %s231
      %s233 = sphi 0, %s231
      %s234 = sphi 0, %s233
      %s248 = sphi 0, %s234
      %s252 = sphi 0, %s252
      %s254 = sphi 0, %s252
      %s255 = sphi 0, %s254
      %s269 = sphi 0, %s255
      %s273 = sphi 0, %s273
      %s275 = sphi 0, %s273
      %s276 = sphi 0, %s275
      %s290 = sphi 0, %s276
      %s296 = sphi 0, %s298
      %s299 = sphi 0, %s296
      %s300 = sphi 0, %s299
      %s316 = sphi 0, %s300
    $region4: #{tpu_custom_call.1} parent=1 // loop_header_branch
      %32 = sbr.rel (%p30) target = $region8
    $region5: #{tpu_custom_call.1} parent=1 // loop_body
      %s34 = ssub.s32 %s29, 1
      %s35 = ssub.s32 %s29, 2
      %s36 = sadd.s32 %s29, 1
      %s37 = ssub.s32 %s29, %s36
      %p38 = scmp.eq.s32.totalorder %s37, 0
      %s40 = sadd.s32 %s39, 1
      %s41 = scalar_select %p38, %s39, %s40
      %p44 = pneg %p38
      %p45 = scmp.eq.s32.totalorder %s29, 1
      %p46 = por %p44, %p45
      %p47 = scmp.ne.s32.totalorder %s39, %s42
      %p48 = scmp.eq.s32.totalorder %s29, 0
      %p49 = por %p47, %p48
      %p50 = scmp.ne.s32.totalorder %s39, %s42
      %p51 = scmp.eq.s32.totalorder %s34, 1
      %p52 = por %p50, %p51
      %p53 = scmp.ne.s32.totalorder %s42, %s43
      %p54 = scmp.eq.s32.totalorder %s34, 0
      %p55 = por %p53, %p54
      %p56 = scmp.ne.s32.totalorder %s42, %s43
      %p57 = scmp.eq.s32.totalorder %s35, 1
      %p58 = por %p56, %p57
      %p60 = scmp.ne.s32.totalorder %s43, %s59
      %p61 = scmp.eq.s32.totalorder %s35, 0
      %p62 = por %p60, %p61
      %s64 = sadd.s32 %s63, 1
      %p67 = scmp.eq.s32.totalorder %s29, 1
      %p68 = scmp.ne.s32.totalorder %s63, %s65
      %p69 = scmp.eq.s32.totalorder %s29, 0
      %p70 = por %p68, %p69
      %p71 = scmp.ne.s32.totalorder %s63, %s65
      %p72 = scmp.eq.s32.totalorder %s34, 1
      %p73 = por %p71, %p72
      %p74 = scmp.ne.s32.totalorder %s65, %s66
      %p75 = scmp.eq.s32.totalorder %s34, 0
      %p76 = por %p74, %p75
      %p77 = scmp.ne.s32.totalorder %s65, %s66
      %p78 = scmp.eq.s32.totalorder %s35, 1
      %p79 = por %p77, %p78
      %p81 = scmp.ne.s32.totalorder %s66, %s80
      %p82 = scmp.eq.s32.totalorder %s35, 0
      %p83 = por %p81, %p82
      %s85 = sadd.s32 %s84, 1
      %p88 = scmp.eq.s32.totalorder %s29, 1
      %p89 = scmp.ne.s32.totalorder %s84, %s86
      %p90 = scmp.eq.s32.totalorder %s29, 0
      %p91 = por %p89, %p90
      %p92 = scmp.ne.s32.totalorder %s84, %s86
      %p93 = scmp.eq.s32.totalorder %s34, 1
      %p94 = por %p92, %p93
      %p95 = scmp.ne.s32.totalorder %s86, %s87
      %p96 = scmp.eq.s32.totalorder %s34, 0
      %p97 = por %p95, %p96
      %p98 = scmp.ne.s32.totalorder %s86, %s87
      %p99 = scmp.eq.s32.totalorder %s35, 1
      %p100 = por %p98, %p99
      %p102 = scmp.ne.s32.totalorder %s87, %s101
      %p103 = scmp.eq.s32.totalorder %s35, 0
      %p104 = por %p102, %p103
      %s106 = sadd.s32 %s105, 1
      %p109 = scmp.eq.s32.totalorder %s29, 1
      %p110 = scmp.ne.s32.totalorder %s105, %s107
      %p111 = scmp.eq.s32.totalorder %s29, 0
      %p112 = por %p110, %p111
      %p113 = scmp.ne.s32.totalorder %s105, %s107
      %p114 = scmp.eq.s32.totalorder %s34, 1
      %p115 = por %p113, %p114
      %p116 = scmp.ne.s32.totalorder %s107, %s108
      %p117 = scmp.eq.s32.totalorder %s34, 0
      %p118 = por %p116, %p117
      %p119 = scmp.ne.s32.totalorder %s107, %s108
      %p120 = scmp.eq.s32.totalorder %s35, 1
      %p121 = por %p119, %p120
      %p123 = scmp.ne.s32.totalorder %s108, %s122
      %p124 = scmp.eq.s32.totalorder %s35, 0
      %p125 = por %p123, %p124
      %s127 = sadd.s32 %s126, 1
      %p130 = scmp.eq.s32.totalorder %s29, 1
      %p131 = scmp.ne.s32.totalorder %s126, %s128
      %p132 = scmp.eq.s32.totalorder %s29, 0
      %p133 = por %p131, %p132
      %p134 = scmp.ne.s32.totalorder %s126, %s128
      %p135 = scmp.eq.s32.totalorder %s34, 1
      %p136 = por %p134, %p135
      %p137 = scmp.ne.s32.totalorder %s128, %s129
      %p138 = scmp.eq.s32.totalorder %s34, 0
      %p139 = por %p137, %p138
      %p140 = scmp.ne.s32.totalorder %s128, %s129
      %p141 = scmp.eq.s32.totalorder %s35, 1
      %p142 = por %p140, %p141
      %p144 = scmp.ne.s32.totalorder %s129, %s143
      %p145 = scmp.eq.s32.totalorder %s35, 0
      %p146 = por %p144, %p145
      %s148 = sadd.s32 %s147, 1
      %p151 = scmp.eq.s32.totalorder %s29, 1
      %p152 = scmp.ne.s32.totalorder %s147, %s149
      %p153 = scmp.eq.s32.totalorder %s29, 0
      %p154 = por %p152, %p153
      %p155 = scmp.ne.s32.totalorder %s147, %s149
      %p156 = scmp.eq.s32.totalorder %s34, 1
      %p157 = por %p155, %p156
      %p158 = scmp.ne.s32.totalorder %s149, %s150
      %p159 = scmp.eq.s32.totalorder %s34, 0
      %p160 = por %p158, %p159
      %p161 = scmp.ne.s32.totalorder %s149, %s150
      %p162 = scmp.eq.s32.totalorder %s35, 1
      %p163 = por %p161, %p162
      %p165 = scmp.ne.s32.totalorder %s150, %s164
      %p166 = scmp.eq.s32.totalorder %s35, 0
      %p167 = por %p165, %p166
      %s169 = sadd.s32 %s168, 1
      %p172 = scmp.eq.s32.totalorder %s29, 1
      %p173 = scmp.ne.s32.totalorder %s168, %s170
      %p174 = scmp.eq.s32.totalorder %s29, 0
      %p175 = por %p173, %p174
      %p176 = scmp.ne.s32.totalorder %s168, %s170
      %p177 = scmp.eq.s32.totalorder %s34, 1
      %p178 = por %p176, %p177
      %p179 = scmp.ne.s32.totalorder %s170, %s171
      %p180 = scmp.eq.s32.totalorder %s34, 0
      %p181 = por %p179, %p180
      %p182 = scmp.ne.s32.totalorder %s170, %s171
      %p183 = scmp.eq.s32.totalorder %s35, 1
      %p184 = por %p182, %p183
      %p186 = scmp.ne.s32.totalorder %s171, %s185
      %p187 = scmp.eq.s32.totalorder %s35, 0
      %p188 = por %p186, %p187
      %s190 = sadd.s32 %s189, 1
      %p193 = scmp.eq.s32.totalorder %s29, 1
      %p194 = scmp.ne.s32.totalorder %s189, %s191
      %p195 = scmp.eq.s32.totalorder %s29, 0
      %p196 = por %p194, %p195
      %p197 = scmp.ne.s32.totalorder %s189, %s191
      %p198 = scmp.eq.s32.totalorder %s34, 1
      %p199 = por %p197, %p198
      %p200 = scmp.ne.s32.totalorder %s191, %s192
      %p201 = scmp.eq.s32.totalorder %s34, 0
      %p202 = por %p200, %p201
      %p203 = scmp.ne.s32.totalorder %s191, %s192
      %p204 = scmp.eq.s32.totalorder %s35, 1
      %p205 = por %p203, %p204
      %p207 = scmp.ne.s32.totalorder %s192, %s206
      %p208 = scmp.eq.s32.totalorder %s35, 0
      %p209 = por %p207, %p208
      %s211 = sadd.s32 %s210, 1
      %p214 = scmp.eq.s32.totalorder %s29, 1
      %p215 = scmp.ne.s32.totalorder %s210, %s212
      %p216 = scmp.eq.s32.totalorder %s29, 0
      %p217 = por %p215, %p216
      %p218 = scmp.ne.s32.totalorder %s210, %s212
      %p219 = scmp.eq.s32.totalorder %s34, 1
      %p220 = por %p218, %p219
      %p221 = scmp.ne.s32.totalorder %s212, %s213
      %p222 = scmp.eq.s32.totalorder %s34, 0
      %p223 = por %p221, %p222
      %p224 = scmp.ne.s32.totalorder %s212, %s213
      %p225 = scmp.eq.s32.totalorder %s35, 1
      %p226 = por %p224, %p225
      %p228 = scmp.ne.s32.totalorder %s213, %s227
      %p229 = scmp.eq.s32.totalorder %s35, 0
      %p230 = por %p228, %p229
      %s232 = sadd.s32 %s231, 1
      %p235 = scmp.eq.s32.totalorder %s29, 1
      %p236 = scmp.ne.s32.totalorder %s231, %s233
      %p237 = scmp.eq.s32.totalorder %s29, 0
      %p238 = por %p236, %p237
      %p239 = scmp.ne.s32.totalorder %s231, %s233
      %p240 = scmp.eq.s32.totalorder %s34, 1
      %p241 = por %p239, %p240
      %p242 = scmp.ne.s32.totalorder %s233, %s234
      %p243 = scmp.eq.s32.totalorder %s34, 0
      %p244 = por %p242, %p243
      %p245 = scmp.ne.s32.totalorder %s233, %s234
      %p246 = scmp.eq.s32.totalorder %s35, 1
      %p247 = por %p245, %p246
      %p249 = scmp.ne.s32.totalorder %s234, %s248
      %p250 = scmp.eq.s32.totalorder %s35, 0
      %p251 = por %p249, %p250
      %s253 = sadd.s32 %s252, 1
      %p256 = scmp.eq.s32.totalorder %s29, 1
      %p257 = scmp.ne.s32.totalorder %s252, %s254
      %p258 = scmp.eq.s32.totalorder %s29, 0
      %p259 = por %p257, %p258
      %p260 = scmp.ne.s32.totalorder %s252, %s254
      %p261 = scmp.eq.s32.totalorder %s34, 1
      %p262 = por %p260, %p261
      %p263 = scmp.ne.s32.totalorder %s254, %s255
      %p264 = scmp.eq.s32.totalorder %s34, 0
      %p265 = por %p263, %p264
      %p266 = scmp.ne.s32.totalorder %s254, %s255
      %p267 = scmp.eq.s32.totalorder %s35, 1
      %p268 = por %p266, %p267
      %p270 = scmp.ne.s32.totalorder %s255, %s269
      %p271 = scmp.eq.s32.totalorder %s35, 0
      %p272 = por %p270, %p271
      %s274 = sadd.s32 %s273, 1
      %p277 = scmp.eq.s32.totalorder %s29, 1
      %p278 = scmp.ne.s32.totalorder %s273, %s275
      %p279 = scmp.eq.s32.totalorder %s29, 0
      %p280 = por %p278, %p279
      %p281 = scmp.ne.s32.totalorder %s273, %s275
      %p282 = scmp.eq.s32.totalorder %s34, 1
      %p283 = por %p281, %p282
      %p284 = scmp.ne.s32.totalorder %s275, %s276
      %p285 = scmp.eq.s32.totalorder %s34, 0
      %p286 = por %p284, %p285
      %p287 = scmp.ne.s32.totalorder %s275, %s276
      %p288 = scmp.eq.s32.totalorder %s35, 1
      %p289 = por %p287, %p288
      %p291 = scmp.ne.s32.totalorder %s276, %s290
      %p292 = scmp.eq.s32.totalorder %s35, 0
      %p293 = por %p291, %p292
      %s294 = ssub.s32 %s29, %s36
      %p295 = scmp.eq.s32.totalorder %s294, 0
      %s297 = sadd.s32 %s296, 1
      %s298 = scalar_select %p295, %s296, %s297
      %p301 = pneg %p295
      %p302 = scmp.eq.s32.totalorder %s29, 1
      %p303 = por %p301, %p302
      %p304 = scmp.ne.s32.totalorder %s296, %s299
      %p305 = scmp.eq.s32.totalorder %s29, 0
      %p306 = por %p304, %p305
      %p307 = scmp.ne.s32.totalorder %s296, %s299
      %p308 = scmp.eq.s32.totalorder %s34, 1
      %p309 = por %p307, %p308
      %p310 = scmp.ne.s32.totalorder %s299, %s300
      %p311 = scmp.eq.s32.totalorder %s34, 0
      %p312 = por %p310, %p311
      %p313 = scmp.ne.s32.totalorder %s299, %s300
      %p314 = scmp.eq.s32.totalorder %s35, 1
      %p315 = por %p313, %p314
      %p317 = scmp.ne.s32.totalorder %s300, %s316
      %p318 = scmp.eq.s32.totalorder %s35, 0
      %p319 = por %p317, %p318
      %p320 = scmp.le.s32.totalorder 1, %s29
      %p321 = scmp.lt.s32.totalorder %s29, 3
      %p322 = pnand %p320, %p321
      %p323 = pneg %p322
      // Predicated region
      $region9: #{tpu_custom_call.1} parent=5 // pred_check
        _
      $region10: #{tpu_custom_call.1} parent=5 // pred_check_branch
        %325 = sbr.rel (%p322) target = $region12
      $region11: #{tpu_custom_call.1} parent=5 // pred_region
        %s326 = ssub.s32 %s29, 1
        // Predicated region
        $region13: #{tpu_custom_call.1} parent=11 // pred_check
          %p327 = pneg %p76
        $region14: #{tpu_custom_call.1} parent=11 // pred_check_branch
          %329 = sbr.rel (%p327) target = $region16
        $region15: #{tpu_custom_call.1} parent=11 // pred_region
          %s331 = ssub.s32 16, 16
          %332 = vsyncadd [#allocation6], %s331
          %s334 = sshll.u32 [#allocation5], 4
          %s335 = int_to_ptr.vmem [resolvable:$true] %s334
          %337 = dma.hbm_to_vmem [thread:$0]  %s1, 16, %s335, [#allocation6]
        $region16: #{tpu_custom_call.1} parent=11 // pred_fallthru
          _
        // Predicated region
        $region17: #{tpu_custom_call.1} parent=11 // pred_check
          %p338 = pneg %p97
        $region18: #{tpu_custom_call.1} parent=11 // pred_check_branch
          %340 = sbr.rel (%p338) target = $region20
        $region19: #{tpu_custom_call.1} parent=11 // pred_region
          %s342 = ssub.s32 16, 16
          %343 = vsyncadd [#allocation6], %s342
          %s345 = sshll.u32 [#allocation7], 4
          %s346 = int_to_ptr.vmem [resolvable:$true] %s345
          %348 = dma.hbm_to_vmem [thread:$0]  %s2, 16, %s346, [#allocation6]
        $region20: #{tpu_custom_call.1} parent=11 // pred_fallthru
          _
        // Predicated region
        $region21: #{tpu_custom_call.1} parent=11 // pred_check
          %p349 = pneg %p118
        $region22: #{tpu_custom_call.1} parent=11 // pred_check_branch
          %351 = sbr.rel (%p349) target = $region24
        $region23: #{tpu_custom_call.1} parent=11 // pred_region
          %s353 = ssub.s32 256, 256
          %354 = vsyncadd [#allocation9], %s353
          %s355 = sshll.u32 [#allocation8], 4
          %s356 = int_to_ptr.vmem [resolvable:$true] %s355
          %361 = dma.hbm_to_vmem [thread:$0]  %s3, 256, %s356, [#allocation9], 64, 64, 4
        $region24: #{tpu_custom_call.1} parent=11 // pred_fallthru
          _
        // Predicated region
        $region25: #{tpu_custom_call.1} parent=11 // pred_check
          %p362 = pneg %p139
        $region26: #{tpu_custom_call.1} parent=11 // pred_check_branch
          %364 = sbr.rel (%p362) target = $region28
        $region27: #{tpu_custom_call.1} parent=11 // pred_region
          %s366 = ssub.s32 256, 256
          %367 = vsyncadd [#allocation9], %s366
          %s368 = sshll.u32 [#allocation10], 4
          %s369 = int_to_ptr.vmem [resolvable:$true] %s368
          %374 = dma.hbm_to_vmem [thread:$0]  %s4, 256, %s369, [#allocation9], 64, 64, 4
        $region28: #{tpu_custom_call.1} parent=11 // pred_fallthru
          _
        // Predicated region
        $region29: #{tpu_custom_call.1} parent=11 // pred_check
          %p375 = pneg %p160
        $region30: #{tpu_custom_call.1} parent=11 // pred_check_branch
          %377 = sbr.rel (%p375) target = $region32
        $region31: #{tpu_custom_call.1} parent=11 // pred_region
          %s379 = ssub.s32 256, 256
          %380 = vsyncadd [#allocation12], %s379
          %s381 = sshll.u32 [#allocation11], 4
          %s382 = int_to_ptr.vmem [resolvable:$true] %s381
          %387 = dma.hbm_to_vmem [thread:$0]  %s5, 256, %s382, [#allocation12], 64, 64, 4
        $region32: #{tpu_custom_call.1} parent=11 // pred_fallthru
          _
        // Predicated region
        $region33: #{tpu_custom_call.1} parent=11 // pred_check
          %p388 = pneg %p181
        $region34: #{tpu_custom_call.1} parent=11 // pred_check_branch
          %390 = sbr.rel (%p388) target = $region36
        $region35: #{tpu_custom_call.1} parent=11 // pred_region
          %s392 = ssub.s32 16, 16
          %393 = vsyncadd [#allocation12], %s392
          %s395 = sshll.u32 [#allocation13], 4
          %s396 = int_to_ptr.vmem [resolvable:$true] %s395
          %398 = dma.hbm_to_vmem [thread:$0]  %s6, 16, %s396, [#allocation12]
        $region36: #{tpu_custom_call.1} parent=11 // pred_fallthru
          _
        // Predicated region
        $region37: #{tpu_custom_call.1} parent=11 // pred_check
          %p399 = pneg %p202
        $region38: #{tpu_custom_call.1} parent=11 // pred_check_branch
          %401 = sbr.rel (%p399) target = $region40
        $region39: #{tpu_custom_call.1} parent=11 // pred_region
          %s403 = ssub.s32 16, 16
          %404 = vsyncadd [#allocation15], %s403
          %s406 = sshll.u32 [#allocation14], 4
          %s407 = int_to_ptr.vmem [resolvable:$true] %s406
          %409 = dma.hbm_to_vmem [thread:$0]  %s7, 16, %s407, [#allocation15]
        $region40: #{tpu_custom_call.1} parent=11 // pred_fallthru
          _
        // Predicated region
        $region41: #{tpu_custom_call.1} parent=11 // pred_check
          %p410 = pneg %p223
        $region42: #{tpu_custom_call.1} parent=11 // pred_check_branch
          %412 = sbr.rel (%p410) target = $region44
        $region43: #{tpu_custom_call.1} parent=11 // pred_region
          %s414 = ssub.s32 16, 16
          %415 = vsyncadd [#allocation15], %s414
          %s417 = sshll.u32 [#allocation16], 4
          %s418 = int_to_ptr.vmem [resolvable:$true] %s417
          %420 = dma.hbm_to_vmem [thread:$0]  %s8, 16, %s418, [#allocation15]
        $region44: #{tpu_custom_call.1} parent=11 // pred_fallthru
          _
        // Predicated region
        $region45: #{tpu_custom_call.1} parent=11 // pred_check
          %p421 = pneg %p244
        $region46: #{tpu_custom_call.1} parent=11 // pred_check_branch
          %423 = sbr.rel (%p421) target = $region48
        $region47: #{tpu_custom_call.1} parent=11 // pred_region
          _
        $region48: #{tpu_custom_call.1} parent=11 // pred_fallthru
          _
        // Predicated region
        $region49: #{tpu_custom_call.1} parent=11 // pred_check
          %p424 = pneg %p265
        $region50: #{tpu_custom_call.1} parent=11 // pred_check_branch
          %426 = sbr.rel (%p424) target = $region52
        $region51: #{tpu_custom_call.1} parent=11 // pred_region
          _
        $region52: #{tpu_custom_call.1} parent=11 // pred_fallthru
          _
        // Predicated region
        $region53: #{tpu_custom_call.1} parent=11 // pred_check
          %p427 = pneg %p286
        $region54: #{tpu_custom_call.1} parent=11 // pred_check_branch
          %429 = sbr.rel (%p427) target = $region56
        $region55: #{tpu_custom_call.1} parent=11 // pred_region
          %s431 = ssub.s32 128, 128
          %432 = vsyncadd [#allocation18], %s431
          %s434 = sshll.u32 [#allocation17], 4
          %s435 = int_to_ptr.vmem [resolvable:$true] %s434
          %437 = dma.hbm_to_vmem [thread:$0]  %s11, 128, %s435, [#allocation18]
        $region56: #{tpu_custom_call.1} parent=11 // pred_fallthru
          _
      $region12: #{tpu_custom_call.1} parent=5 // pred_fallthru
        _
      %p438 = scmp.lt.s32.totalorder %s29, 2
      // Predicated region
      $region57: #{tpu_custom_call.1} parent=5 // pred_check
        %p439 = pneg %p438
      $region58: #{tpu_custom_call.1} parent=5 // pred_check_branch
        %441 = sbr.rel (%p439) target = $region60
      $region59: #{tpu_custom_call.1} parent=5 // pred_region
        // Predicated region
        $region61: #{tpu_custom_call.1} parent=59 // pred_check
          %p442 = pneg %p49
        $region62: #{tpu_custom_call.1} parent=59 // pred_check_branch
          %444 = sbr.rel (%p442) target = $region64
        $region63: #{tpu_custom_call.1} parent=59 // pred_region
          %s445 = sand.u32 %s39, 1
          %s446 = scalar_lea.sflag [#allocation3], %s445
          %s447 = sand.u32 %s39, 1
          %s448 = smul.addr %s447, 8
          %s449 = scalar_lea.vmem [#allocation2], %s448
          %s451 = ssub.s32 128, 128
          %452 = vsyncadd %s446, %s451
          %s453 = smul.addr %s29, 128
          %s454 = scalar_lea.hbm %s0, %s453
          %s456 = sshll.u32 %s449, 4
          %s457 = int_to_ptr.vmem [resolvable:$true] %s456
          %459 = dma.hbm_to_vmem [thread:$0]  %s454, 128, %s457, %s446
        $region64: #{tpu_custom_call.1} parent=59 // pred_fallthru
          _
      $region60: #{tpu_custom_call.1} parent=5 // pred_fallthru
        _
      %p460 = scmp.le.s32.totalorder 1, %s29
      %p461 = scmp.lt.s32.totalorder %s29, 3
      %p462 = pnand %p460, %p461
      %p463 = pneg %p462
      // Predicated region
      $region65: #{tpu_custom_call.1} parent=5 // pred_check
        _
      $region66: #{tpu_custom_call.1} parent=5 // pred_check_branch
        %465 = sbr.rel (%p462) target = $region68
      $region67: #{tpu_custom_call.1} parent=5 // pred_region
        %s466 = ssub.s32 %s29, 1
        %s467 = sand.u32 %s42, 1
        %s468 = scalar_lea.sflag [#allocation3], %s467
        %s469 = sand.u32 %s42, 1
        %s470 = smul.addr %s469, 8
        %s471 = scalar_lea.vmem [#allocation2], %s470
        // Predicated region
        $region69: #{tpu_custom_call.1} parent=67 // pred_check
          %p472 = pneg %p55
        $region70: #{tpu_custom_call.1} parent=67 // pred_check_branch
          %474 = sbr.rel (%p472) target = $region72
        $region71: #{tpu_custom_call.1} parent=67 // pred_region
          %475 = dma.done %s468, 128
        $region72: #{tpu_custom_call.1} parent=67 // pred_fallthru
          _
        // Predicated region
        $region73: #{tpu_custom_call.1} parent=67 // pred_check
          %p476 = pneg %p76
        $region74: #{tpu_custom_call.1} parent=67 // pred_check_branch
          %478 = sbr.rel (%p476) target = $region76
        $region75: #{tpu_custom_call.1} parent=67 // pred_region
          %479 = dma.done [#allocation6], 16
        $region76: #{tpu_custom_call.1} parent=67 // pred_fallthru
          _
        // Predicated region
        $region77: #{tpu_custom_call.1} parent=67 // pred_check
          %p480 = pneg %p97
        $region78: #{tpu_custom_call.1} parent=67 // pred_check_branch
          %482 = sbr.rel (%p480) target = $region80
        $region79: #{tpu_custom_call.1} parent=67 // pred_region
          %483 = dma.done [#allocation6], 16
        $region80: #{tpu_custom_call.1} parent=67 // pred_fallthru
          _
        // Predicated region
        $region81: #{tpu_custom_call.1} parent=67 // pred_check
          %p484 = pneg %p118
        $region82: #{tpu_custom_call.1} parent=67 // pred_check_branch
          %486 = sbr.rel (%p484) target = $region84
        $region83: #{tpu_custom_call.1} parent=67 // pred_region
          %487 = dma.done [#allocation9], 256
        $region84: #{tpu_custom_call.1} parent=67 // pred_fallthru
          _
        // Predicated region
        $region85: #{tpu_custom_call.1} parent=67 // pred_check
          %p488 = pneg %p139
        $region86: #{tpu_custom_call.1} parent=67 // pred_check_branch
          %490 = sbr.rel (%p488) target = $region88
        $region87: #{tpu_custom_call.1} parent=67 // pred_region
          %491 = dma.done [#allocation9], 256
        $region88: #{tpu_custom_call.1} parent=67 // pred_fallthru
          _
        // Predicated region
        $region89: #{tpu_custom_call.1} parent=67 // pred_check
          %p492 = pneg %p160
        $region90: #{tpu_custom_call.1} parent=67 // pred_check_branch
          %494 = sbr.rel (%p492) target = $region92
        $region91: #{tpu_custom_call.1} parent=67 // pred_region
          %495 = dma.done [#allocation12], 256
        $region92: #{tpu_custom_call.1} parent=67 // pred_fallthru
          _
        // Predicated region
        $region93: #{tpu_custom_call.1} parent=67 // pred_check
          %p496 = pneg %p181
        $region94: #{tpu_custom_call.1} parent=67 // pred_check_branch
          %498 = sbr.rel (%p496) target = $region96
        $region95: #{tpu_custom_call.1} parent=67 // pred_region
          %499 = dma.done [#allocation12], 16
        $region96: #{tpu_custom_call.1} parent=67 // pred_fallthru
          _
        // Predicated region
        $region97: #{tpu_custom_call.1} parent=67 // pred_check
          %p500 = pneg %p202
        $region98: #{tpu_custom_call.1} parent=67 // pred_check_branch
          %502 = sbr.rel (%p500) target = $region100
        $region99: #{tpu_custom_call.1} parent=67 // pred_region
          %503 = dma.done [#allocation15], 16
        $region100: #{tpu_custom_call.1} parent=67 // pred_fallthru
          _
        // Predicated region
        $region101: #{tpu_custom_call.1} parent=67 // pred_check
          %p504 = pneg %p223
        $region102: #{tpu_custom_call.1} parent=67 // pred_check_branch
          %506 = sbr.rel (%p504) target = $region104
        $region103: #{tpu_custom_call.1} parent=67 // pred_region
          %507 = dma.done [#allocation15], 16
        $region104: #{tpu_custom_call.1} parent=67 // pred_fallthru
          _
        // Predicated region
        $region105: #{tpu_custom_call.1} parent=67 // pred_check
          %p508 = pneg %p286
        $region106: #{tpu_custom_call.1} parent=67 // pred_check_branch
          %510 = sbr.rel (%p508) target = $region108
        $region107: #{tpu_custom_call.1} parent=67 // pred_region
          %511 = dma.done [#allocation18], 128
        $region108: #{tpu_custom_call.1} parent=67 // pred_fallthru
          _
        %s512 = sand.u32 %s42, 1
        %s513 = scalar_lea.sflag [#allocation3], %s512
        %s514 = sand.u32 %s42, 1
        %s515 = smul.addr %s514, 8
        %s516 = scalar_lea.vmem [#allocation2], %s515
        %p517 = pneg %p55
        %p518 = pneg %p52
        %p519 = pneg %p76
        %p520 = pneg %p73
        %p521 = pneg %p97
        %p522 = pneg %p94
        %p523 = pneg %p118
        %p524 = pneg %p115
        %p525 = pneg %p139
        %p526 = pneg %p136
        %p527 = pneg %p160
        %p528 = pneg %p157
        %p529 = pneg %p181
        %p530 = pneg %p178
        %p531 = pneg %p202
        %p532 = pneg %p199
        %p533 = pneg %p223
        %p534 = pneg %p220
        %p535 = pneg %p244
        %p536 = pneg %p241
        %p537 = pneg %p265
        %p538 = pneg %p262
        %p539 = pneg %p286
        %p540 = pneg %p283
        %p541 = pneg %p312
        %p542 = pneg %p309
        %s543 = sand.u32 %s299, 1
        %s544 = scalar_lea.sflag [#allocation4], %s543
        %s545 = sand.u32 %s299, 1
        %s546 = smul.addr %s545, 8
        %s547 = scalar_lea.vmem [#allocation19], %s546
        %v549 = vld [vmem:[%s471] sm:$0xff]
        %v550 = vld [vmem:[#allocation5] sm:$0x1]
        %v551 = vld [vmem:[#allocation7] sm:$0x1]
        %vm552 = vcmask 261120
        %v553 = vsel %vm552, %v549, 0.0
        %554 = vadd.xlane.f32.xlu0 %v553
        %v555 = vpop.xlane.xlu0 %554
        %v556 = vrcp.pop 32.0
        %v557 = vmul.f32 %v555, %v556
        %v558 = vsub.f32 %v549, %v557
        %v559 = vmul.f32 %v558, %v558
        %v560 = vsel %vm552, %v559, 0.0
        %561 = vadd.xlane.f32.xlu0 %v560
        %v562 = vpop.xlane.xlu0 %561
        %v563 = vmul.f32 %v562, %v556
        %v564 = vadd.f32 %v563, 1e-05
        %v565 = vrsqrt.pop %v564
        %v566 = vmul.f32 %v558, %v565
        %v568 = vlaneseq
        %v569 = vshrl.u32 %v568, 7
        %v570 = vsub.s32 0, %v569
        %v571 = vrot.slane %v550, %v570
        %v573 = vmul.f32 %v566, %v571
        %v575 = vlaneseq
        %v576 = vshrl.u32 %v575, 7
        %v577 = vsub.s32 0, %v576
        %v578 = vrot.slane %v551, %v577
        %v580 = vadd.f32 %v573, %v578
        %v581 = vld [vmem:[#allocation17] sm:$0xff]
        %v582 = vld [vmem:[#allocation8] sm:$0xf]
        %v583 = vld [vmem:[#allocation8 + $0x4] sm:$0xf]
        %v584 = vld [vmem:[#allocation8 + $0x8] sm:$0xf]
        %v585 = vld [vmem:[#allocation8 + $0xc] sm:$0xf]
        %v586 = vld [vmem:[#allocation10] sm:$0xf]
        %v587 = vld [vmem:[#allocation10 + $0x4] sm:$0xf]
        %v588 = vld [vmem:[#allocation10 + $0x8] sm:$0xf]
        %v589 = vld [vmem:[#allocation10 + $0xc] sm:$0xf]
        %v590 = vld [vmem:[#allocation11] sm:$0xf]
        %v591 = vld [vmem:[#allocation11 + $0x4] sm:$0xf]
        %v592 = vld [vmem:[#allocation11 + $0x8] sm:$0xf]
        %v593 = vld [vmem:[#allocation11 + $0xc] sm:$0xf]
        %v594 = vld [vmem:[#allocation13] sm:$0x1]
        %v595 = vld [vmem:[#allocation14] sm:$0x1]
        %v596 = vld [vmem:[#allocation16] sm:$0x1]
        %v597 = vld [vmem:[%s9] sm:$0xf]
        %v598 = vld [vmem:[%s9 + $0x4] sm:$0xf]
        %v599 = vld [vmem:[%s9 + $0x8] sm:$0xf]
        %v600 = vld [vmem:[%s9 + $0xc] sm:$0xf]
        %v601 = vld [vmem:[%s10] sm:$0x1]
        %v602 = vpack.c.bf16 %v580, %v580
        %v604 = vlaneseq
        %v605 = vshrl.u32 %v604, 7
        %v606 = vsub.s32 0, %v605
        %v607 = vrot.slane %v594, %v606
        %v613 = vunpack.c.l.b16 %v582
        %v614 = vunpack.c.l.b16 %v583
        %v615 = vunpack.c.l.b16 %v584
        %v616 = vunpack.c.l.b16 %v585
        %v617 = vpack.c.b16 %v614, %v613
        %v618 = vpack.c.b16 %v616, %v615
        %v622 = vsel %vm552, %v602, 0
        %624 = vmatprep.subr.bf16.mxu0 0
        %625 = vmatpush1.bf16.msra.mxu0 0
        %626 = vmatprep.subr.bf16.mxu0 0
        %627 = vmatpush1.bf16.msra.mxu0 0
        %628 = vmatprep.subr.bf16.mxu0 0
        %629 = vmatpush1.bf16.msra.mxu0 0
        %630 = vmatprep.subr.bf16.mxu0 0
        %631 = vmatpush1.bf16.msra.mxu0 0
        %632 = vmatprep.subr.bf16.mxu0 0
        %633 = vmatpush1.bf16.msra.mxu0 0
        %634 = vmatprep.subr.bf16.mxu0 0
        %635 = vmatpush1.bf16.msra.mxu0 0
        %636 = vmatprep.subr.bf16.mxu0 0
        %637 = vmatpush1.bf16.msra.mxu0 %v618
        %638 = vmatprep.subr.bf16.mxu0 0
        %639 = vmatpush1.bf16.msra.mxu0 %v617
        %640 = vmatprep.subr.bf16.mxu0 0
        %641 = vmatpush2.bf16.msra.mxu0 0
        %642 = vmatprep.subr.bf16.mxu0 0
        %643 = vmatpush2.bf16.msra.mxu0 0
        %644 = vmatprep.subr.bf16.mxu0 0
        %645 = vmatpush2.bf16.msra.mxu0 0
        %646 = vmatprep.subr.bf16.mxu0 0
        %647 = vmatpush2.bf16.msra.mxu0 0
        %648 = vmatprep.subr.bf16.mxu0 0
        %649 = vmatpush2.bf16.msra.mxu0 0
        %650 = vmatprep.subr.bf16.mxu0 0
        %651 = vmatpush2.bf16.msra.mxu0 0
        %652 = vmatprep.subr.bf16.mxu0 0
        %653 = vmatpush2.bf16.msra.mxu0 0
        %654 = vmatprep.subr.bf16.mxu0 0
        %655 = vmatpush2.bf16.msra.mxu0 0
        %656 = vmatprep.mubr.bf16.mxu0 0
        %657 = vmatmul.mubr.bf16.gmra.mxu0 %v622
        %v658 = vpop.f32.mrf.mxu0
        %v659 = vadd.f32 %v607, %v658
        %v660 = vpop.f32.mrf.mxu0
        %v661 = vpop.f32.mrf.mxu0
        %v662 = vpop.f32.mrf.mxu0
        %663 = vdwg.mxu0
        %v665 = vlaneseq
        %v666 = vshrl.u32 %v665, 7
        %v667 = vsub.s32 0, %v666
        %v668 = vrot.slane %v595, %v667
        %v674 = vunpack.c.l.b16 %v586
        %v675 = vunpack.c.l.b16 %v587
        %v676 = vunpack.c.l.b16 %v588
        %v677 = vunpack.c.l.b16 %v589
        %v678 = vpack.c.b16 %v675, %v674
        %v679 = vpack.c.b16 %v677, %v676
        %682 = vmatprep.subr.bf16.mxu0 0
        %683 = vmatpush1.bf16.msra.mxu0 0
        %684 = vmatprep.subr.bf16.mxu0 0
        %685 = vmatpush1.bf16.msra.mxu0 0
        %686 = vmatprep.subr.bf16.mxu0 0
        %687 = vmatpush1.bf16.msra.mxu0 0
        %688 = vmatprep.subr.bf16.mxu0 0
        %689 = vmatpush1.bf16.msra.mxu0 0
        %690 = vmatprep.subr.bf16.mxu0 0
        %691 = vmatpush1.bf16.msra.mxu0 0
        %692 = vmatprep.subr.bf16.mxu0 0
        %693 = vmatpush1.bf16.msra.mxu0 0
        %694 = vmatprep.subr.bf16.mxu0 0
        %695 = vmatpush1.bf16.msra.mxu0 %v679
        %696 = vmatprep.subr.bf16.mxu0 0
        %697 = vmatpush1.bf16.msra.mxu0 %v678
        %698 = vmatprep.subr.bf16.mxu0 0
        %699 = vmatpush2.bf16.msra.mxu0 0
        %700 = vmatprep.subr.bf16.mxu0 0
        %701 = vmatpush2.bf16.msra.mxu0 0
        %702 = vmatprep.subr.bf16.mxu0 0
        %703 = vmatpush2.bf16.msra.mxu0 0
        %704 = vmatprep.subr.bf16.mxu0 0
        %705 = vmatpush2.bf16.msra.mxu0 0
        %706 = vmatprep.subr.bf16.mxu0 0
        %707 = vmatpush2.bf16.msra.mxu0 0
        %708 = vmatprep.subr.bf16.mxu0 0
        %709 = vmatpush2.bf16.msra.mxu0 0
        %710 = vmatprep.subr.bf16.mxu0 0
        %711 = vmatpush2.bf16.msra.mxu0 0
        %712 = vmatprep.subr.bf16.mxu0 0
        %713 = vmatpush2.bf16.msra.mxu0 0
        %714 = vmatprep.mubr.bf16.mxu0 0
        %715 = vmatmul.mubr.bf16.gmra.mxu0 %v622
        %v716 = vpop.f32.mrf.mxu0
        %v717 = vadd.f32 %v668, %v716
        %v718 = vpop.f32.mrf.mxu0
        %v719 = vpop.f32.mrf.mxu0
        %v720 = vpop.f32.mrf.mxu0
        %721 = vdwg.mxu0
        %v723 = vlaneseq
        %v724 = vshrl.u32 %v723, 7
        %v725 = vsub.s32 0, %v724
        %v726 = vrot.slane %v596, %v725
        %v732 = vunpack.c.l.b16 %v590
        %v733 = vunpack.c.l.b16 %v591
        %v734 = vunpack.c.l.b16 %v592
        %v735 = vunpack.c.l.b16 %v593
        %v736 = vpack.c.b16 %v733, %v732
        %v737 = vpack.c.b16 %v735, %v734
        %740 = vmatprep.subr.bf16.mxu0 0
        %741 = vmatpush1.bf16.msra.mxu0 0
        %742 = vmatprep.subr.bf16.mxu0 0
        %743 = vmatpush1.bf16.msra.mxu0 0
        %744 = vmatprep.subr.bf16.mxu0 0
        %745 = vmatpush1.bf16.msra.mxu0 0
        %746 = vmatprep.subr.bf16.mxu0 0
        %747 = vmatpush1.bf16.msra.mxu0 0
        %748 = vmatprep.subr.bf16.mxu0 0
        %749 = vmatpush1.bf16.msra.mxu0 0
        %750 = vmatprep.subr.bf16.mxu0 0
        %751 = vmatpush1.bf16.msra.mxu0 0
        %752 = vmatprep.subr.bf16.mxu0 0
        %753 = vmatpush1.bf16.msra.mxu0 %v737
        %754 = vmatprep.subr.bf16.mxu0 0
        %755 = vmatpush1.bf16.msra.mxu0 %v736
        %756 = vmatprep.subr.bf16.mxu0 0
        %757 = vmatpush2.bf16.msra.mxu0 0
        %758 = vmatprep.subr.bf16.mxu0 0
        %759 = vmatpush2.bf16.msra.mxu0 0
        %760 = vmatprep.subr.bf16.mxu0 0
        %761 = vmatpush2.bf16.msra.mxu0 0
        %762 = vmatprep.subr.bf16.mxu0 0
        %763 = vmatpush2.bf16.msra.mxu0 0
        %764 = vmatprep.subr.bf16.mxu0 0
        %765 = vmatpush2.bf16.msra.mxu0 0
        %766 = vmatprep.subr.bf16.mxu0 0
        %767 = vmatpush2.bf16.msra.mxu0 0
        %768 = vmatprep.subr.bf16.mxu0 0
        %769 = vmatpush2.bf16.msra.mxu0 0
        %770 = vmatprep.subr.bf16.mxu0 0
        %771 = vmatpush2.bf16.msra.mxu0 0
        %772 = vmatprep.mubr.bf16.mxu0 0
        %773 = vmatmul.mubr.bf16.gmra.mxu0 %v622
        %v774 = vpop.f32.mrf.mxu0
        %v775 = vadd.f32 %v726, %v774
        %v776 = vpop.f32.mrf.mxu0
        %v777 = vpop.f32.mrf.mxu0
        %v778 = vpop.f32.mrf.mxu0
        %779 = vdwg.mxu0
        %v780 = vpack.c.bf16 %v659, %v659
        %v781 = vpack.c.bf16 %v717, %v717
        %v782 = vpack.c.bf16 %v775, %v775
        %vm783 = vcmask 64512
        %v785 = vsel %vm783, %v780, 0
        %v788 = vsel %vm783, %v781, 0
        %790 = vmatprep.subr.bf16.mxu0 0
        %791 = vmatpush1.bf16.xpose.msra.mxu0 0
        %792 = vmatprep.subr.bf16.mxu0 0
        %793 = vmatpush1.bf16.xpose.msra.mxu0 0
        %794 = vmatprep.subr.bf16.mxu0 0
        %795 = vmatpush1.bf16.xpose.msra.mxu0 0
        %796 = vmatprep.subr.bf16.mxu0 0
        %797 = vmatpush1.bf16.xpose.msra.mxu0 0
        %798 = vmatprep.subr.bf16.mxu0 0
        %799 = vmatpush1.bf16.xpose.msra.mxu0 0
        %800 = vmatprep.subr.bf16.mxu0 0
        %801 = vmatpush1.bf16.xpose.msra.mxu0 0
        %802 = vmatprep.subr.bf16.mxu0 0
        %803 = vmatpush1.bf16.xpose.msra.mxu0 0
        %804 = vmatprep.subr.bf16.mxu0 0
        %805 = vmatpush1.bf16.xpose.msra.mxu0 %v788
        %806 = vmatprep.subr.bf16.mxu0 0
        %807 = vmatpush2.bf16.xpose.msra.mxu0 0
        %808 = vmatprep.subr.bf16.mxu0 0
        %809 = vmatpush2.bf16.xpose.msra.mxu0 0
        %810 = vmatprep.subr.bf16.mxu0 0
        %811 = vmatpush2.bf16.xpose.msra.mxu0 0
        %812 = vmatprep.subr.bf16.mxu0 0
        %813 = vmatpush2.bf16.xpose.msra.mxu0 0
        %814 = vmatprep.subr.bf16.mxu0 0
        %815 = vmatpush2.bf16.xpose.msra.mxu0 0
        %816 = vmatprep.subr.bf16.mxu0 0
        %817 = vmatpush2.bf16.xpose.msra.mxu0 0
        %818 = vmatprep.subr.bf16.mxu0 0
        %819 = vmatpush2.bf16.xpose.msra.mxu0 0
        %820 = vmatprep.subr.bf16.mxu0 0
        %821 = vmatpush2.bf16.xpose.msra.mxu0 0
        %822 = vmatprep.mubr.bf16.mxu0 0
        %823 = vmatmul.mubr.bf16.gmra.mxu0 %v785
        %v824 = vpop.f32.mrf.mxu0
        %v825 = vadd.f32 0.0, %v824
        %v826 = vpop.f32.mrf.mxu0
        %v827 = vpop.f32.mrf.mxu0
        %v828 = vpop.f32.mrf.mxu0
        %829 = vdwg.mxu0
        %v830 = vmul.f32 %v825, 0.35355338
        %v831 = vadd.f32 %v830, %v581
        %v832 = vsel %vm783, %v831, -inf
        %833 = vmax.xlane.f32.xlu0 %v832
        %v834 = vpop.xlane.xlu0 %833
        %v835 = vsub.f32 %v831, %v834
        %v836 = vmul.f32 %v835, 1.442695
        %v837 = vpow.pop %v836
        %v838 = vsel %vm783, %v837, 0.0
        %839 = vadd.xlane.f32.xlu0 %v838
        %v840 = vpop.xlane.xlu0 %839
        %v841 = vrcp.pop %v840
        %v842 = vmul.f32 %v837, %v841
        %v843 = vpack.c.bf16 %v842, %v842
        %v845 = vsel %vm783, %v843, 0
        %vm847 = vcmask 1043456
        %v849 = vsel %vm847, %v782, 0
        %851 = vmatprep.subr.bf16.mxu0 0
        %852 = vmatpush1.bf16.msra.mxu0 0
        %853 = vmatprep.subr.bf16.mxu0 0
        %854 = vmatpush1.bf16.msra.mxu0 0
        %855 = vmatprep.subr.bf16.mxu0 0
        %856 = vmatpush1.bf16.msra.mxu0 0
        %857 = vmatprep.subr.bf16.mxu0 0
        %858 = vmatpush1.bf16.msra.mxu0 0
        %859 = vmatprep.subr.bf16.mxu0 0
        %860 = vmatpush1.bf16.msra.mxu0 0
        %861 = vmatprep.subr.bf16.mxu0 0
        %862 = vmatpush1.bf16.msra.mxu0 0
        %863 = vmatprep.subr.bf16.mxu0 0
        %864 = vmatpush1.bf16.msra.mxu0 0
        %865 = vmatprep.subr.bf16.mxu0 0
        %866 = vmatpush1.bf16.msra.mxu0 %v849
        %867 = vmatprep.subr.bf16.mxu0 0
        %868 = vmatpush2.bf16.msra.mxu0 0
        %869 = vmatprep.subr.bf16.mxu0 0
        %870 = vmatpush2.bf16.msra.mxu0 0
        %871 = vmatprep.subr.bf16.mxu0 0
        %872 = vmatpush2.bf16.msra.mxu0 0
        %873 = vmatprep.subr.bf16.mxu0 0
        %874 = vmatpush2.bf16.msra.mxu0 0
        %875 = vmatprep.subr.bf16.mxu0 0
        %876 = vmatpush2.bf16.msra.mxu0 0
        %877 = vmatprep.subr.bf16.mxu0 0
        %878 = vmatpush2.bf16.msra.mxu0 0
        %879 = vmatprep.subr.bf16.mxu0 0
        %880 = vmatpush2.bf16.msra.mxu0 0
        %881 = vmatprep.subr.bf16.mxu0 0
        %882 = vmatpush2.bf16.msra.mxu0 0
        %883 = vmatprep.mubr.bf16.mxu0 0
        %884 = vmatmul.mubr.bf16.gmra.mxu0 %v845
        %v885 = vpop.f32.mrf.mxu0
        %v886 = vadd.f32 0.0, %v885
        %v887 = vpop.f32.mrf.mxu0
        %v888 = vpop.f32.mrf.mxu0
        %v889 = vpop.f32.mrf.mxu0
        %890 = vdwg.mxu0
        %v891 = vpack.c.bf16 %v886, %v886
        %893 = vrot.lane.b32.xlu0 %v780, 120
        %v894 = vpop.permute.xlu0 %893
        %896 = vrot.lane.b32.xlu0 %v781, 120
        %v897 = vpop.permute.xlu0 %896
        %v899 = vsel %vm783, %v894, 0
        %v902 = vsel %vm783, %v897, 0
        %904 = vmatprep.subr.bf16.mxu0 0
        %905 = vmatpush1.bf16.xpose.msra.mxu0 0
        %906 = vmatprep.subr.bf16.mxu0 0
        %907 = vmatpush1.bf16.xpose.msra.mxu0 0
        %908 = vmatprep.subr.bf16.mxu0 0
        %909 = vmatpush1.bf16.xpose.msra.mxu0 0
        %910 = vmatprep.subr.bf16.mxu0 0
        %911 = vmatpush1.bf16.xpose.msra.mxu0 0
        %912 = vmatprep.subr.bf16.mxu0 0
        %913 = vmatpush1.bf16.xpose.msra.mxu0 0
        %914 = vmatprep.subr.bf16.mxu0 0
        %915 = vmatpush1.bf16.xpose.msra.mxu0 0
        %916 = vmatprep.subr.bf16.mxu0 0
        %917 = vmatpush1.bf16.xpose.msra.mxu0 0
        %918 = vmatprep.subr.bf16.mxu0 0
        %919 = vmatpush1.bf16.xpose.msra.mxu0 %v902
        %920 = vmatprep.subr.bf16.mxu0 0
        %921 = vmatpush2.bf16.xpose.msra.mxu0 0
        %922 = vmatprep.subr.bf16.mxu0 0
        %923 = vmatpush2.bf16.xpose.msra.mxu0 0
        %924 = vmatprep.subr.bf16.mxu0 0
        %925 = vmatpush2.bf16.xpose.msra.mxu0 0
        %926 = vmatprep.subr.bf16.mxu0 0
        %927 = vmatpush2.bf16.xpose.msra.mxu0 0
        %928 = vmatprep.subr.bf16.mxu0 0
        %929 = vmatpush2.bf16.xpose.msra.mxu0 0
        %930 = vmatprep.subr.bf16.mxu0 0
        %931 = vmatpush2.bf16.xpose.msra.mxu0 0
        %932 = vmatprep.subr.bf16.mxu0 0
        %933 = vmatpush2.bf16.xpose.msra.mxu0 0
        %934 = vmatprep.subr.bf16.mxu0 0
        %935 = vmatpush2.bf16.xpose.msra.mxu0 0
        %936 = vmatprep.mubr.bf16.mxu0 0
        %937 = vmatmul.mubr.bf16.gmra.mxu0 %v899
        %v938 = vpop.f32.mrf.mxu0
        %v939 = vadd.f32 0.0, %v938
        %v940 = vpop.f32.mrf.mxu0
        %v941 = vpop.f32.mrf.mxu0
        %v942 = vpop.f32.mrf.mxu0
        %943 = vdwg.mxu0
        %v944 = vmul.f32 %v939, 0.35355338
        %v945 = vadd.f32 %v944, %v581
        %v946 = vsel %vm783, %v945, -inf
        %947 = vmax.xlane.f32.xlu0 %v946
        %v948 = vpop.xlane.xlu0 %947
        %v949 = vsub.f32 %v945, %v948
        %v950 = vmul.f32 %v949, 1.442695
        %v951 = vpow.pop %v950
        %v952 = vsel %vm783, %v951, 0.0
        %953 = vadd.xlane.f32.xlu0 %v952
        %v954 = vpop.xlane.xlu0 %953
        %v955 = vrcp.pop %v954
        %v956 = vmul.f32 %v951, %v955
        %v957 = vpack.c.bf16 %v956, %v956
        %959 = vrot.lane.b32.xlu0 %v782, 120
        %v960 = vpop.permute.xlu0 %959
        %v962 = vsel %vm783, %v957, 0
        %v965 = vsel %vm847, %v960, 0
        %967 = vmatprep.subr.bf16.mxu0 0
        %968 = vmatpush1.bf16.msra.mxu0 0
        %969 = vmatprep.subr.bf16.mxu0 0
        %970 = vmatpush1.bf16.msra.mxu0 0
        %971 = vmatprep.subr.bf16.mxu0 0
        %972 = vmatpush1.bf16.msra.mxu0 0
        %973 = vmatprep.subr.bf16.mxu0 0
        %974 = vmatpush1.bf16.msra.mxu0 0
        %975 = vmatprep.subr.bf16.mxu0 0
        %976 = vmatpush1.bf16.msra.mxu0 0
        %977 = vmatprep.subr.bf16.mxu0 0
        %978 = vmatpush1.bf16.msra.mxu0 0
        %979 = vmatprep.subr.bf16.mxu0 0
        %980 = vmatpush1.bf16.msra.mxu0 0
        %981 = vmatprep.subr.bf16.mxu0 0
        %982 = vmatpush1.bf16.msra.mxu0 %v965
        %983 = vmatprep.subr.bf16.mxu0 0
        %984 = vmatpush2.bf16.msra.mxu0 0
        %985 = vmatprep.subr.bf16.mxu0 0
        %986 = vmatpush2.bf16.msra.mxu0 0
        %987 = vmatprep.subr.bf16.mxu0 0
        %988 = vmatpush2.bf16.msra.mxu0 0
        %989 = vmatprep.subr.bf16.mxu0 0
        %990 = vmatpush2.bf16.msra.mxu0 0
        %991 = vmatprep.subr.bf16.mxu0 0
        %992 = vmatpush2.bf16.msra.mxu0 0
        %993 = vmatprep.subr.bf16.mxu0 0
        %994 = vmatpush2.bf16.msra.mxu0 0
        %995 = vmatprep.subr.bf16.mxu0 0
        %996 = vmatpush2.bf16.msra.mxu0 0
        %997 = vmatprep.subr.bf16.mxu0 0
        %998 = vmatpush2.bf16.msra.mxu0 0
        %999 = vmatprep.mubr.bf16.mxu0 0
        %1000 = vmatmul.mubr.bf16.gmra.mxu0 %v962
        %v1001 = vpop.f32.mrf.mxu0
        %v1002 = vadd.f32 0.0, %v1001
        %v1003 = vpop.f32.mrf.mxu0
        %v1004 = vpop.f32.mrf.mxu0
        %v1005 = vpop.f32.mrf.mxu0
        %1006 = vdwg.mxu0
        %v1007 = vpack.c.bf16 %v1002, %v1002
        %v1009 = vsel %vm783, %v1007, 0
        %v1012 = vsel %vm847, %v598, 0
        %1014 = vmatprep.subr.bf16.mxu0 0
        %1015 = vmatpush1.bf16.msra.mxu0 0
        %1016 = vmatprep.subr.bf16.mxu0 0
        %1017 = vmatpush1.bf16.msra.mxu0 0
        %1018 = vmatprep.subr.bf16.mxu0 0
        %1019 = vmatpush1.bf16.msra.mxu0 0
        %1020 = vmatprep.subr.bf16.mxu0 0
        %1021 = vmatpush1.bf16.msra.mxu0 0
        %1022 = vmatprep.subr.bf16.mxu0 0
        %1023 = vmatpush1.bf16.msra.mxu0 0
        %1024 = vmatprep.subr.bf16.mxu0 0
        %1025 = vmatpush1.bf16.msra.mxu0 0
        %1026 = vmatprep.subr.bf16.mxu0 0
        %1027 = vmatpush1.bf16.msra.mxu0 0
        %1028 = vmatprep.subr.bf16.mxu0 0
        %1029 = vmatpush1.bf16.msra.mxu0 %v1012
        %1030 = vmatprep.subr.bf16.mxu0 0
        %1031 = vmatpush2.bf16.msra.mxu0 0
        %1032 = vmatprep.subr.bf16.mxu0 0
        %1033 = vmatpush2.bf16.msra.mxu0 0
        %1034 = vmatprep.subr.bf16.mxu0 0
        %1035 = vmatpush2.bf16.msra.mxu0 0
        %1036 = vmatprep.subr.bf16.mxu0 0
        %1037 = vmatpush2.bf16.msra.mxu0 0
        %1038 = vmatprep.subr.bf16.mxu0 0
        %1039 = vmatpush2.bf16.msra.mxu0 0
        %1040 = vmatprep.subr.bf16.mxu0 0
        %1041 = vmatpush2.bf16.msra.mxu0 0
        %1042 = vmatprep.subr.bf16.mxu0 0
        %1043 = vmatpush2.bf16.msra.mxu0 0
        %1044 = vmatprep.subr.bf16.mxu0 0
        %1045 = vmatpush2.bf16.msra.mxu0 0
        %1046 = vmatprep.mubr.bf16.mxu0 0
        %1047 = vmatmul.mubr.bf16.gmra.mxu0 %v1009
        %v1048 = vpop.f32.mrf.mxu0
        %v1049 = vadd.f32 0.0, %v1048
        %v1050 = vpop.f32.mrf.mxu0
        %v1051 = vpop.f32.mrf.mxu0
        %v1052 = vpop.f32.mrf.mxu0
        %1053 = vdwg.mxu0
        %v1055 = vsel %vm783, %v891, 0
        %v1058 = vsel %vm847, %v597, 0
        %1060 = vmatprep.subr.bf16.mxu0 0
        %1061 = vmatpush1.bf16.msra.mxu0 0
        %1062 = vmatprep.subr.bf16.mxu0 0
        %1063 = vmatpush1.bf16.msra.mxu0 0
        %1064 = vmatprep.subr.bf16.mxu0 0
        %1065 = vmatpush1.bf16.msra.mxu0 0
        %1066 = vmatprep.subr.bf16.mxu0 0
        %1067 = vmatpush1.bf16.msra.mxu0 0
        %1068 = vmatprep.subr.bf16.mxu0 0
        %1069 = vmatpush1.bf16.msra.mxu0 0
        %1070 = vmatprep.subr.bf16.mxu0 0
        %1071 = vmatpush1.bf16.msra.mxu0 0
        %1072 = vmatprep.subr.bf16.mxu0 0
        %1073 = vmatpush1.bf16.msra.mxu0 0
        %1074 = vmatprep.subr.bf16.mxu0 0
        %1075 = vmatpush1.bf16.msra.mxu0 %v1058
        %1076 = vmatprep.subr.bf16.mxu0 0
        %1077 = vmatpush2.bf16.msra.mxu0 0
        %1078 = vmatprep.subr.bf16.mxu0 0
        %1079 = vmatpush2.bf16.msra.mxu0 0
        %1080 = vmatprep.subr.bf16.mxu0 0
        %1081 = vmatpush2.bf16.msra.mxu0 0
        %1082 = vmatprep.subr.bf16.mxu0 0
        %1083 = vmatpush2.bf16.msra.mxu0 0
        %1084 = vmatprep.subr.bf16.mxu0 0
        %1085 = vmatpush2.bf16.msra.mxu0 0
        %1086 = vmatprep.subr.bf16.mxu0 0
        %1087 = vmatpush2.bf16.msra.mxu0 0
        %1088 = vmatprep.subr.bf16.mxu0 0
        %1089 = vmatpush2.bf16.msra.mxu0 0
        %1090 = vmatprep.subr.bf16.mxu0 0
        %1091 = vmatpush2.bf16.msra.mxu0 0
        %1092 = vmatprep.mubr.bf16.mxu0 0
        %1093 = vmatmul.mubr.bf16.gmra.mxu0 %v1055
        %v1094 = vpop.f32.mrf.mxu0
        %v1095 = vadd.f32 %v1049, %v1094
        %v1096 = vpop.f32.mrf.mxu0
        %v1097 = vpop.f32.mrf.mxu0
        %v1098 = vpop.f32.mrf.mxu0
        %1099 = vdwg.mxu0
        %1100 = vrot.lane.b32.xlu0 %v780, 112
        %v1101 = vpop.permute.xlu0 %1100
        %1102 = vrot.lane.b32.xlu0 %v781, 112
        %v1103 = vpop.permute.xlu0 %1102
        %v1105 = vsel %vm783, %v1101, 0
        %v1108 = vsel %vm783, %v1103, 0
        %1110 = vmatprep.subr.bf16.mxu0 0
        %1111 = vmatpush1.bf16.xpose.msra.mxu0 0
        %1112 = vmatprep.subr.bf16.mxu0 0
        %1113 = vmatpush1.bf16.xpose.msra.mxu0 0
        %1114 = vmatprep.subr.bf16.mxu0 0
        %1115 = vmatpush1.bf16.xpose.msra.mxu0 0
        %1116 = vmatprep.subr.bf16.mxu0 0
        %1117 = vmatpush1.bf16.xpose.msra.mxu0 0
        %1118 = vmatprep.subr.bf16.mxu0 0
        %1119 = vmatpush1.bf16.xpose.msra.mxu0 0
        %1120 = vmatprep.subr.bf16.mxu0 0
        %1121 = vmatpush1.bf16.xpose.msra.mxu0 0
        %1122 = vmatprep.subr.bf16.mxu0 0
        %1123 = vmatpush1.bf16.xpose.msra.mxu0 0
        %1124 = vmatprep.subr.bf16.mxu0 0
        %1125 = vmatpush1.bf16.xpose.msra.mxu0 %v1108
        %1126 = vmatprep.subr.bf16.mxu0 0
        %1127 = vmatpush2.bf16.xpose.msra.mxu0 0
        %1128 = vmatprep.subr.bf16.mxu0 0
        %1129 = vmatpush2.bf16.xpose.msra.mxu0 0
        %1130 = vmatprep.subr.bf16.mxu0 0
        %1131 = vmatpush2.bf16.xpose.msra.mxu0 0
        %1132 = vmatprep.subr.bf16.mxu0 0
        %1133 = vmatpush2.bf16.xpose.msra.mxu0 0
        %1134 = vmatprep.subr.bf16.mxu0 0
        %1135 = vmatpush2.bf16.xpose.msra.mxu0 0
        %1136 = vmatprep.subr.bf16.mxu0 0
        %1137 = vmatpush2.bf16.xpose.msra.mxu0 0
        %1138 = vmatprep.subr.bf16.mxu0 0
        %1139 = vmatpush2.bf16.xpose.msra.mxu0 0
        %1140 = vmatprep.subr.bf16.mxu0 0
        %1141 = vmatpush2.bf16.xpose.msra.mxu0 0
        %1142 = vmatprep.mubr.bf16.mxu0 0
        %1143 = vmatmul.mubr.bf16.gmra.mxu0 %v1105
        %v1144 = vpop.f32.mrf.mxu0
        %v1145 = vadd.f32 0.0, %v1144
        %v1146 = vpop.f32.mrf.mxu0
        %v1147 = vpop.f32.mrf.mxu0
        %v1148 = vpop.f32.mrf.mxu0
        %1149 = vdwg.mxu0
        %v1150 = vmul.f32 %v1145, 0.35355338
        %v1151 = vadd.f32 %v1150, %v581
        %v1152 = vsel %vm783, %v1151, -inf
        %1153 = vmax.xlane.f32.xlu0 %v1152
        %v1154 = vpop.xlane.xlu0 %1153
        %v1155 = vsub.f32 %v1151, %v1154
        %v1156 = vmul.f32 %v1155, 1.442695
        %v1157 = vpow.pop %v1156
        %v1158 = vsel %vm783, %v1157, 0.0
        %1159 = vadd.xlane.f32.xlu0 %v1158
        %v1160 = vpop.xlane.xlu0 %1159
        %v1161 = vrcp.pop %v1160
        %v1162 = vmul.f32 %v1157, %v1161
        %v1163 = vpack.c.bf16 %v1162, %v1162
        %1164 = vrot.lane.b32.xlu0 %v782, 112
        %v1165 = vpop.permute.xlu0 %1164
        %v1167 = vsel %vm783, %v1163, 0
        %v1170 = vsel %vm847, %v1165, 0
        %1172 = vmatprep.subr.bf16.mxu0 0
        %1173 = vmatpush1.bf16.msra.mxu0 0
        %1174 = vmatprep.subr.bf16.mxu0 0
        %1175 = vmatpush1.bf16.msra.mxu0 0
        %1176 = vmatprep.subr.bf16.mxu0 0
        %1177 = vmatpush1.bf16.msra.mxu0 0
        %1178 = vmatprep.subr.bf16.mxu0 0
        %1179 = vmatpush1.bf16.msra.mxu0 0
        %1180 = vmatprep.subr.bf16.mxu0 0
        %1181 = vmatpush1.bf16.msra.mxu0 0
        %1182 = vmatprep.subr.bf16.mxu0 0
        %1183 = vmatpush1.bf16.msra.mxu0 0
        %1184 = vmatprep.subr.bf16.mxu0 0
        %1185 = vmatpush1.bf16.msra.mxu0 0
        %1186 = vmatprep.subr.bf16.mxu0 0
        %1187 = vmatpush1.bf16.msra.mxu0 %v1170
        %1188 = vmatprep.subr.bf16.mxu0 0
        %1189 = vmatpush2.bf16.msra.mxu0 0
        %1190 = vmatprep.subr.bf16.mxu0 0
        %1191 = vmatpush2.bf16.msra.mxu0 0
        %1192 = vmatprep.subr.bf16.mxu0 0
        %1193 = vmatpush2.bf16.msra.mxu0 0
        %1194 = vmatprep.subr.bf16.mxu0 0
        %1195 = vmatpush2.bf16.msra.mxu0 0
        %1196 = vmatprep.subr.bf16.mxu0 0
        %1197 = vmatpush2.bf16.msra.mxu0 0
        %1198 = vmatprep.subr.bf16.mxu0 0
        %1199 = vmatpush2.bf16.msra.mxu0 0
        %1200 = vmatprep.subr.bf16.mxu0 0
        %1201 = vmatpush2.bf16.msra.mxu0 0
        %1202 = vmatprep.subr.bf16.mxu0 0
        %1203 = vmatpush2.bf16.msra.mxu0 0
        %1204 = vmatprep.mubr.bf16.mxu0 0
        %1205 = vmatmul.mubr.bf16.gmra.mxu0 %v1167
        %v1206 = vpop.f32.mrf.mxu0
        %v1207 = vadd.f32 0.0, %v1206
        %v1208 = vpop.f32.mrf.mxu0
        %v1209 = vpop.f32.mrf.mxu0
        %v1210 = vpop.f32.mrf.mxu0
        %1211 = vdwg.mxu0
        %v1212 = vpack.c.bf16 %v1207, %v1207
        %v1214 = vsel %vm783, %v1212, 0
        %v1217 = vsel %vm847, %v599, 0
        %1219 = vmatprep.subr.bf16.mxu0 0
        %1220 = vmatpush1.bf16.msra.mxu0 0
        %1221 = vmatprep.subr.bf16.mxu0 0
        %1222 = vmatpush1.bf16.msra.mxu0 0
        %1223 = vmatprep.subr.bf16.mxu0 0
        %1224 = vmatpush1.bf16.msra.mxu0 0
        %1225 = vmatprep.subr.bf16.mxu0 0
        %1226 = vmatpush1.bf16.msra.mxu0 0
        %1227 = vmatprep.subr.bf16.mxu0 0
        %1228 = vmatpush1.bf16.msra.mxu0 0
        %1229 = vmatprep.subr.bf16.mxu0 0
        %1230 = vmatpush1.bf16.msra.mxu0 0
        %1231 = vmatprep.subr.bf16.mxu0 0
        %1232 = vmatpush1.bf16.msra.mxu0 0
        %1233 = vmatprep.subr.bf16.mxu0 0
        %1234 = vmatpush1.bf16.msra.mxu0 %v1217
        %1235 = vmatprep.subr.bf16.mxu0 0
        %1236 = vmatpush2.bf16.msra.mxu0 0
        %1237 = vmatprep.subr.bf16.mxu0 0
        %1238 = vmatpush2.bf16.msra.mxu0 0
        %1239 = vmatprep.subr.bf16.mxu0 0
        %1240 = vmatpush2.bf16.msra.mxu0 0
        %1241 = vmatprep.subr.bf16.mxu0 0
        %1242 = vmatpush2.bf16.msra.mxu0 0
        %1243 = vmatprep.subr.bf16.mxu0 0
        %1244 = vmatpush2.bf16.msra.mxu0 0
        %1245 = vmatprep.subr.bf16.mxu0 0
        %1246 = vmatpush2.bf16.msra.mxu0 0
        %1247 = vmatprep.subr.bf16.mxu0 0
        %1248 = vmatpush2.bf16.msra.mxu0 0
        %1249 = vmatprep.subr.bf16.mxu0 0
        %1250 = vmatpush2.bf16.msra.mxu0 0
        %1251 = vmatprep.mubr.bf16.mxu0 0
        %1252 = vmatmul.mubr.bf16.gmra.mxu0 %v1214
        %v1253 = vpop.f32.mrf.mxu0
        %v1254 = vadd.f32 0.0, %v1253
        %v1255 = vpop.f32.mrf.mxu0
        %v1256 = vpop.f32.mrf.mxu0
        %v1257 = vpop.f32.mrf.mxu0
        %1258 = vdwg.mxu0
        %v1259 = vadd.f32 %v1095, %v1254
        %1260 = vrot.lane.b32.xlu0 %v780, 104
        %v1261 = vpop.permute.xlu0 %1260
        %1262 = vrot.lane.b32.xlu0 %v781, 104
        %v1263 = vpop.permute.xlu0 %1262
        %v1265 = vsel %vm783, %v1261, 0
        %v1268 = vsel %vm783, %v1263, 0
        %1270 = vmatprep.subr.bf16.mxu0 0
        %1271 = vmatpush1.bf16.xpose.msra.mxu0 0
        %1272 = vmatprep.subr.bf16.mxu0 0
        %1273 = vmatpush1.bf16.xpose.msra.mxu0 0
        %1274 = vmatprep.subr.bf16.mxu0 0
        %1275 = vmatpush1.bf16.xpose.msra.mxu0 0
        %1276 = vmatprep.subr.bf16.mxu0 0
        %1277 = vmatpush1.bf16.xpose.msra.mxu0 0
        %1278 = vmatprep.subr.bf16.mxu0 0
        %1279 = vmatpush1.bf16.xpose.msra.mxu0 0
        %1280 = vmatprep.subr.bf16.mxu0 0
        %1281 = vmatpush1.bf16.xpose.msra.mxu0 0
        %1282 = vmatprep.subr.bf16.mxu0 0
        %1283 = vmatpush1.bf16.xpose.msra.mxu0 0
        %1284 = vmatprep.subr.bf16.mxu0 0
        %1285 = vmatpush1.bf16.xpose.msra.mxu0 %v1268
        %1286 = vmatprep.subr.bf16.mxu0 0
        %1287 = vmatpush2.bf16.xpose.msra.mxu0 0
        %1288 = vmatprep.subr.bf16.mxu0 0
        %1289 = vmatpush2.bf16.xpose.msra.mxu0 0
        %1290 = vmatprep.subr.bf16.mxu0 0
        %1291 = vmatpush2.bf16.xpose.msra.mxu0 0
        %1292 = vmatprep.subr.bf16.mxu0 0
        %1293 = vmatpush2.bf16.xpose.msra.mxu0 0
        %1294 = vmatprep.subr.bf16.mxu0 0
        %1295 = vmatpush2.bf16.xpose.msra.mxu0 0
        %1296 = vmatprep.subr.bf16.mxu0 0
        %1297 = vmatpush2.bf16.xpose.msra.mxu0 0
        %1298 = vmatprep.subr.bf16.mxu0 0
        %1299 = vmatpush2.bf16.xpose.msra.mxu0 0
        %1300 = vmatprep.subr.bf16.mxu0 0
        %1301 = vmatpush2.bf16.xpose.msra.mxu0 0
        %1302 = vmatprep.mubr.bf16.mxu0 0
        %1303 = vmatmul.mubr.bf16.gmra.mxu0 %v1265
        %v1304 = vpop.f32.mrf.mxu0
        %v1305 = vadd.f32 0.0, %v1304
        %v1306 = vpop.f32.mrf.mxu0
        %v1307 = vpop.f32.mrf.mxu0
        %v1308 = vpop.f32.mrf.mxu0
        %1309 = vdwg.mxu0
        %v1310 = vmul.f32 %v1305, 0.35355338
        %v1311 = vadd.f32 %v1310, %v581
        %v1312 = vsel %vm783, %v1311, -inf
        %1313 = vmax.xlane.f32.xlu0 %v1312
        %v1314 = vpop.xlane.xlu0 %1313
        %v1315 = vsub.f32 %v1311, %v1314
        %v1316 = vmul.f32 %v1315, 1.442695
        %v1317 = vpow.pop %v1316
        %v1318 = vsel %vm783, %v1317, 0.0
        %1319 = vadd.xlane.f32.xlu0 %v1318
        %v1320 = vpop.xlane.xlu0 %1319
        %v1321 = vrcp.pop %v1320
        %v1322 = vmul.f32 %v1317, %v1321
        %v1323 = vpack.c.bf16 %v1322, %v1322
        %1324 = vrot.lane.b32.xlu0 %v782, 104
        %v1325 = vpop.permute.xlu0 %1324
        %v1327 = vsel %vm783, %v1323, 0
        %v1330 = vsel %vm847, %v1325, 0
        %1332 = vmatprep.subr.bf16.mxu0 0
        %1333 = vmatpush1.bf16.msra.mxu0 0
        %1334 = vmatprep.subr.bf16.mxu0 0
        %1335 = vmatpush1.bf16.msra.mxu0 0
        %1336 = vmatprep.subr.bf16.mxu0 0
        %1337 = vmatpush1.bf16.msra.mxu0 0
        %1338 = vmatprep.subr.bf16.mxu0 0
        %1339 = vmatpush1.bf16.msra.mxu0 0
        %1340 = vmatprep.subr.bf16.mxu0 0
        %1341 = vmatpush1.bf16.msra.mxu0 0
        %1342 = vmatprep.subr.bf16.mxu0 0
        %1343 = vmatpush1.bf16.msra.mxu0 0
        %1344 = vmatprep.subr.bf16.mxu0 0
        %1345 = vmatpush1.bf16.msra.mxu0 0
        %1346 = vmatprep.subr.bf16.mxu0 0
        %1347 = vmatpush1.bf16.msra.mxu0 %v1330
        %1348 = vmatprep.subr.bf16.mxu0 0
        %1349 = vmatpush2.bf16.msra.mxu0 0
        %1350 = vmatprep.subr.bf16.mxu0 0
        %1351 = vmatpush2.bf16.msra.mxu0 0
        %1352 = vmatprep.subr.bf16.mxu0 0
        %1353 = vmatpush2.bf16.msra.mxu0 0
        %1354 = vmatprep.subr.bf16.mxu0 0
        %1355 = vmatpush2.bf16.msra.mxu0 0
        %1356 = vmatprep.subr.bf16.mxu0 0
        %1357 = vmatpush2.bf16.msra.mxu0 0
        %1358 = vmatprep.subr.bf16.mxu0 0
        %1359 = vmatpush2.bf16.msra.mxu0 0
        %1360 = vmatprep.subr.bf16.mxu0 0
        %1361 = vmatpush2.bf16.msra.mxu0 0
        %1362 = vmatprep.subr.bf16.mxu0 0
        %1363 = vmatpush2.bf16.msra.mxu0 0
        %1364 = vmatprep.mubr.bf16.mxu0 0
        %1365 = vmatmul.mubr.bf16.gmra.mxu0 %v1327
        %v1366 = vpop.f32.mrf.mxu0
        %v1367 = vadd.f32 0.0, %v1366
        %v1368 = vpop.f32.mrf.mxu0
        %v1369 = vpop.f32.mrf.mxu0
        %v1370 = vpop.f32.mrf.mxu0
        %1371 = vdwg.mxu0
        %v1372 = vpack.c.bf16 %v1367, %v1367
        %v1374 = vsel %vm783, %v1372, 0
        %v1377 = vsel %vm847, %v600, 0
        %1379 = vmatprep.subr.bf16.mxu0 0
        %1380 = vmatpush1.bf16.msra.mxu0 0
        %1381 = vmatprep.subr.bf16.mxu0 0
        %1382 = vmatpush1.bf16.msra.mxu0 0
        %1383 = vmatprep.subr.bf16.mxu0 0
        %1384 = vmatpush1.bf16.msra.mxu0 0
        %1385 = vmatprep.subr.bf16.mxu0 0
        %1386 = vmatpush1.bf16.msra.mxu0 0
        %1387 = vmatprep.subr.bf16.mxu0 0
        %1388 = vmatpush1.bf16.msra.mxu0 0
        %1389 = vmatprep.subr.bf16.mxu0 0
        %1390 = vmatpush1.bf16.msra.mxu0 0
        %1391 = vmatprep.subr.bf16.mxu0 0
        %1392 = vmatpush1.bf16.msra.mxu0 0
        %1393 = vmatprep.subr.bf16.mxu0 0
        %1394 = vmatpush1.bf16.msra.mxu0 %v1377
        %1395 = vmatprep.subr.bf16.mxu0 0
        %1396 = vmatpush2.bf16.msra.mxu0 0
        %1397 = vmatprep.subr.bf16.mxu0 0
        %1398 = vmatpush2.bf16.msra.mxu0 0
        %1399 = vmatprep.subr.bf16.mxu0 0
        %1400 = vmatpush2.bf16.msra.mxu0 0
        %1401 = vmatprep.subr.bf16.mxu0 0
        %1402 = vmatpush2.bf16.msra.mxu0 0
        %1403 = vmatprep.subr.bf16.mxu0 0
        %1404 = vmatpush2.bf16.msra.mxu0 0
        %1405 = vmatprep.subr.bf16.mxu0 0
        %1406 = vmatpush2.bf16.msra.mxu0 0
        %1407 = vmatprep.subr.bf16.mxu0 0
        %1408 = vmatpush2.bf16.msra.mxu0 0
        %1409 = vmatprep.subr.bf16.mxu0 0
        %1410 = vmatpush2.bf16.msra.mxu0 0
        %1411 = vmatprep.mubr.bf16.mxu0 0
        %1412 = vmatmul.mubr.bf16.gmra.mxu0 %v1374
        %v1413 = vpop.f32.mrf.mxu0
        %v1414 = vadd.f32 0.0, %v1413
        %v1415 = vpop.f32.mrf.mxu0
        %v1416 = vpop.f32.mrf.mxu0
        %v1417 = vpop.f32.mrf.mxu0
        %1418 = vdwg.mxu0
        %v1419 = vadd.f32 %v1259, %v1414
        %v1421 = vlaneseq
        %v1422 = vshrl.u32 %v1421, 7
        %v1423 = vsub.s32 0, %v1422
        %v1424 = vrot.slane %v601, %v1423
        %v1426 = vadd.f32 %v1419, %v1424
        %v1427 = vadd.f32 %v549, %v1426
        %1428 = vst.msk [vmem:[%s547] sm:$0xff] %vm552, %v1427
        %s1429 = sand.u32 %s299, 1
        %s1430 = scalar_lea.sflag [#allocation4], %s1429
        %s1431 = sand.u32 %s299, 1
        %s1432 = smul.addr %s1431, 8
        %s1433 = scalar_lea.vmem [#allocation19], %s1432
        // Predicated region
        $region109: #{tpu_custom_call.1} parent=67 // pred_check
          %p1434 = pneg %p309
        $region110: #{tpu_custom_call.1} parent=67 // pred_check_branch
          %1436 = sbr.rel (%p1434) target = $region112
        $region111: #{tpu_custom_call.1} parent=67 // pred_region
          %s1438 = ssub.s32 128, 128
          %1439 = vsyncadd %s1430, %s1438
          %s1440 = smul.addr %s34, 128
          %s1441 = scalar_lea.hbm %s12, %s1440
          %s1443 = sshll.u32 %s1433, 4
          %s1444 = int_to_ptr.vmem [resolvable:$true] %s1443
          %1446 = dma.vmem_to_hbm [thread:$0]  %s1444, 128, %s1441, %s1430
        $region112: #{tpu_custom_call.1} parent=67 // pred_fallthru
          _
      $region68: #{tpu_custom_call.1} parent=5 // pred_fallthru
        _
      %p1447 = scmp.le.s32.totalorder 2, %s29
      // Predicated region
      $region113: #{tpu_custom_call.1} parent=5 // pred_check
        %p1448 = pneg %p1447
      $region114: #{tpu_custom_call.1} parent=5 // pred_check_branch
        %1450 = sbr.rel (%p1448) target = $region116
      $region115: #{tpu_custom_call.1} parent=5 // pred_region
        %s1451 = ssub.s32 %s29, 2
        // Predicated region
        $region117: #{tpu_custom_call.1} parent=115 // pred_check
          %p1452 = pneg %p315
        $region118: #{tpu_custom_call.1} parent=115 // pred_check_branch
          %1454 = sbr.rel (%p1452) target = $region120
        $region119: #{tpu_custom_call.1} parent=115 // pred_region
          %s1455 = sand.u32 %s300, 1
          %s1456 = scalar_lea.sflag [#allocation4], %s1455
          %s1457 = sand.u32 %s300, 1
          %s1458 = smul.addr %s1457, 8
          %s1459 = scalar_lea.vmem [#allocation19], %s1458
          %1460 = dma.done %s1456, 128
        $region120: #{tpu_custom_call.1} parent=115 // pred_fallthru
          _
      $region116: #{tpu_custom_call.1} parent=5 // pred_fallthru
        _
    $region6: #{tpu_custom_call.1} parent=1 // loop_footer
      %s33 = sadd.s32 1, %s29
    $region7: #{tpu_custom_call.1} parent=1 // loop_footer_branch
      %28 = sbr.rel target = $region3
    $region8: #{tpu_custom_call.1} parent=1 // loop_exit
      _
    %1461 = vsyncpa [#allocation3], 1
    %s1462 = scalar_lea.sflag [#allocation3], 1
    %1463 = vsyncpa %s1462, 1
    %1464 = vsyncpa [#allocation6], 1
    %1465 = vsyncpa [#allocation9], 1
    %1466 = vsyncpa [#allocation12], 1
    %1467 = vsyncpa [#allocation15], 1
    %1468 = vsyncpa [#allocation18], 1
    %1469 = vsyncpa [#allocation4], 1
    %s1470 = scalar_lea.sflag [#allocation4], 1
    %1471 = vsyncpa %s1470, 1

</llo_original>
